<compile_context>
chip_gen: v7x
topology: tpu7x:2x2x1
jax: 0.10.0
libtpu: 0.0.40
codegen_flags: <defaults>
</compile_context>

<pallas_src>
import functools

import jax
import jax.numpy as jnp
from jax.experimental import pallas as pl
from jax.experimental.pallas import tpu as pltpu


NEGATIVE_SLOPE = 0.2   # GATv2Conv default
MASK_BIAS = -1e30      # additive softmax mask for non-edges


def make_gatv2_fused_kernel(heads, out_chs):
    """Builds one Pallas kernel computing the whole GATv2 stack.

    Per layer (GATv2Conv, concat=False, add_self_loops=True):
      [xl | xr] = x @ [Wl | Wr] + [bl | br]           (single lane-dense MXU matmul)
      e[i,j,h]  = att_h . leaky_relu(xl[j,h] + xr[i,h])
      alpha     = softmax_j(e + adj_bias)             (adj_bias built once: 0 / -1e30)
      out[i]    = mean_h sum_j alpha[i,j,h] * xl[j,h] + bias ; ReLU
    The last layer's output goes through log_softmax(dim=-1).
    """
    num_layers = len(out_chs)

    def kernel(*refs):
        x_ref, adj_ref = refs[0], refs[1]
        o_ref = refs[-1]
        p_refs = refs[2:-1]            # 4 refs per layer: w_cat, b_cat, att, bias

        x = x_ref[...]                                             # [N, F_in]
        n = x.shape[0]
        # Additive mask computed ONCE, replicated across heads on the sublane axis,
        # and reused by every layer (replaces layers*heads compare+selects).
        adj_bias = jnp.where(adj_ref[...] > 0, 0.0, MASK_BIAS)     # [N_dst, N_src]
        adj_bias_hn = jnp.concatenate([adj_bias] * heads, axis=0)  # [H*N,  N_src]

        for li in range(num_layers):
            w_ref, b_ref, att_ref, bias_ref = p_refs[4 * li:4 * li + 4]
            c = out_chs[li]
            hc = heads * c

            # Fused lin_l | lin_r projection: ONE MXU matmul -> [N, 2*H*C]
            # (128 lanes for the hidden layers: fully lane-dense output).
            xlr = (jnp.dot(x, w_ref[...], preferred_element_type=jnp.float32)
                   + b_ref[...])
            xl = xlr[:, :hc]            # source-side projection  [N, H*C]
            xr = xlr[:, hc:]            # target-side projection  [N, H*C]

            # Pairwise GATv2 features: pair add, leaky_relu and att-weighting are
            # computed ONCE at full H*C lane width (single VPU pass).
            pair = xl[None, :, :] + xr[:, None, :]                 # [N_dst, N_src, H*C]
            lrelu = jnp.where(pair > 0, pair, NEGATIVE_SLOPE * pair)
            weighted = lrelu * att_ref[...][None]                  # [N_dst, N_src, H*C]

            # e_h[i, j] = att_h . leaky_relu(xl[j] + xr[i]); heads stacked on sublanes
            # so the masked softmax below runs ONCE for all heads.
            e_stack = jnp.concatenate(
                [jnp.sum(weighted[:, :, h * c:(h + 1) * c], axis=-1)
                 for h in range(heads)], axis=0)                   # [H*N, N]
            e_stack = e_stack + adj_bias_hn
            e_stack = e_stack - jnp.max(e_stack, axis=-1, keepdims=True)
            p = jnp.exp(e_stack)
            s = jnp.sum(p, axis=-1, keepdims=True)
            # EUP reciprocal; the 1/heads head-mean (concat=False) is folded into it.
            alpha = p * pl.reciprocal(s * float(heads), approx=True)   # [H*N, N]

            # Re-pack so head aggregation + head mean is ONE MXU matmul:
            #   A[i, h*N + j]     = alpha_h[i, j]       -> [N,   H*N] (lane-stacked heads)
            #   XLs[h*N + j, :]   = xl[j, h*C:(h+1)*C]  -> [H*N, C  ] (sublane-stacked)
            a_cat = jnp.concatenate(
                [alpha[h * n:(h + 1) * n, :] for h in range(heads)], axis=1)
            xl_stack = jnp.concatenate(
                [xl[:, h * c:(h + 1) * c] for h in range(heads)], axis=0)
            acc = jnp.dot(a_cat, xl_stack, preferred_element_type=jnp.float32)

            out = acc + bias_ref[...]          # head mean already folded into alpha
            out = jnp.maximum(out, 0.0)        # ReLU after every conv
            # F.dropout: identity in eval mode.
            x = out

        # Final log_softmax(dim=-1).
        m = jnp.max(x, axis=-1, keepdims=True)
        z = x - m
        lse = jnp.log(jnp.sum(jnp.exp(z), axis=-1, keepdims=True))
        o_ref[...] = z - lse

    return kernel


def pack_layer_params(params):
    """(wl, bl, wr, br, att[H,C], bias[1,C]) -> fused-kernel params."""
    wl, bl, wr, br, att, bias = params
    w_cat = jnp.concatenate([wl, wr], axis=-1)        # [F_in, 2*H*C]
    b_cat = jnp.concatenate([bl, br], axis=-1)        # [1,    2*H*C]
    att_flat = att.reshape(1, -1)                     # [1,    H*C]  (head-major)
    return w_cat, b_cat, att_flat, bias


def gatv2_forward_pallas(x, adj, layer_params, heads):
    """Whole GATv2 forward (all layers + final log_softmax) in ONE pallas_call."""
    out_chs = tuple(p[5].shape[-1] for p in layer_params)
    packed = [t for p in layer_params for t in pack_layer_params(p)]
    kernel = make_gatv2_fused_kernel(heads, out_chs)
    n = x.shape[0]
    vmem = pl.BlockSpec(memory_space=pltpu.MemorySpace.VMEM)
    # Whole problem is VMEM-resident (small-graph regime, no grid).
    return pl.pallas_call(
        kernel,
        out_shape=jax.ShapeDtypeStruct((n, out_chs[-1]), jnp.float32),
        in_specs=[vmem] * (2 + len(packed)),
        out_specs=vmem,
    )(x, adj, *packed)


# ---------------------- pure-JAX reference (for checking) ----------------------
def gatv2_layer_ref(x, adj, params, heads, out_ch, final_log_softmax):
    wl, bl, wr, br, att, bias = params
    n = x.shape[0]
    xl = (x @ wl + bl).reshape(n, heads, out_ch)
    xr = (x @ wr + br).reshape(n, heads, out_ch)
    pair = xl[None, :, :, :] + xr[:, None, :, :]                 # [Ni, Nj, H, C]
    lrelu = jnp.where(pair > 0, pair, NEGATIVE_SLOPE * pair)
    e = jnp.sum(lrelu * att[None, None, :, :], axis=-1)          # [Ni, Nj, H]
    e = jnp.where(adj[:, :, None] > 0, e, -1e30)
    e = e - jnp.max(e, axis=1, keepdims=True)
    p = jnp.exp(e)
    alpha = p / jnp.sum(p, axis=1, keepdims=True)                # [Ni, Nj, H]
    out = jnp.einsum('ijh,jhc->ihc', alpha, xl)                  # [Ni, H, C]
    out = out.mean(axis=1) + bias
    out = jnp.maximum(out, 0.0)
    if final_log_softmax:
        out = jax.nn.log_softmax(out, axis=-1)
    return out


def gatv2_forward_ref(x, adj, layer_params, heads):
    num_layers = len(layer_params)
    for li, params in enumerate(layer_params):
        out_ch = params[5].shape[-1]
        x = gatv2_layer_ref(x, adj, params, heads, out_ch,
                            final_log_softmax=(li == num_layers - 1))
    return x


# ------------------------------- param init -----------------------------------
def init_gatv2_conv(key, in_ch, out_ch, heads):
    k1, k2, k3 = jax.random.split(key, 3)

    def glorot(k, shape, fan_in, fan_out):
        lim = (6.0 / (fan_in + fan_out)) ** 0.5
        return jax.random.uniform(k, shape, jnp.float32, -lim, lim)

    wl = glorot(k1, (in_ch, heads * out_ch), in_ch, heads * out_ch)
    wr = glorot(k2, (in_ch, heads * out_ch), in_ch, heads * out_ch)
    bl = jnp.zeros((1, heads * out_ch), jnp.float32)
    br = jnp.zeros((1, heads * out_ch), jnp.float32)
    att = glorot(k3, (heads, out_ch), out_ch, out_ch)
    bias = jnp.zeros((1, out_ch), jnp.float32)
    return (wl, bl, wr, br, att, bias)


if __name__ == "__main__":
    key = jax.random.PRNGKey(0)

    # Small shapes implied by the module.
    N = 8               # number of nodes
    in_channels = 4
    hidden_units = 32   # kwargs['hidden_units']
    out_channels = 4
    heads = 2           # kwargs['heads_attention'] == kwargs['headsAttention']
    number_layers = 3

    k_x, k_p = jax.random.split(key)
    x = jax.random.normal(k_x, (N, in_channels), jnp.float32)

    # Synthetic edge_index (PyG convention: row 0 = source, row 1 = target).
    src = jnp.array([0, 1, 2, 3, 4, 5, 6, 7, 0, 2, 5, 1], dtype=jnp.int32)
    dst = jnp.array([1, 2, 3, 4, 5, 6, 7, 0, 4, 6, 1, 7], dtype=jnp.int32)

    # Dense adjacency mask adj[dst, src] + self loops (GATv2Conv add_self_loops=True).
    adj = jnp.zeros((N, N), jnp.float32).at[dst, src].set(1.0)
    adj = jnp.maximum(adj, jnp.eye(N, dtype=jnp.float32))

    # Layer parameters: in -> hidden, hidden -> hidden, hidden -> out.
    dims = [(in_channels, hidden_units), (hidden_units, hidden_units),
            (hidden_units, out_channels)]
    keys = jax.random.split(k_p, number_layers)
    layer_params = [init_gatv2_conv(keys[i], dims[i][0], dims[i][1], heads)
                    for i in range(number_layers)]

    fwd = jax.jit(functools.partial(gatv2_forward_pallas, heads=heads))
    out = fwd(x, adj, layer_params)
    out = jax.block_until_ready(out)

    ref = gatv2_forward_ref(x, adj, layer_params, heads)
    assert out.shape == (N, out_channels), out.shape
    # Tolerance accounts for the EUP approximate reciprocal in the softmax denominator.
    assert jnp.allclose(out, ref, atol=2e-3, rtol=2e-3), (
        f"max abs diff {jnp.max(jnp.abs(out - ref))}")

    print("KERNEL_OK")
</pallas_src>

<mosaic_0001>
module attributes {stable_mosaic.version = 11 : i64} {
  func.func @kernel(%arg0: memref<8x4xf32, #tpu.memory_space<vmem>>, %arg1: memref<8x8xf32, #tpu.memory_space<vmem>>, %arg2: memref<4x128xf32, #tpu.memory_space<vmem>>, %arg3: memref<1x128xf32, #tpu.memory_space<vmem>>, %arg4: memref<1x64xf32, #tpu.memory_space<vmem>>, %arg5: memref<1x32xf32, #tpu.memory_space<vmem>>, %arg6: memref<32x128xf32, #tpu.memory_space<vmem>>, %arg7: memref<1x128xf32, #tpu.memory_space<vmem>>, %arg8: memref<1x64xf32, #tpu.memory_space<vmem>>, %arg9: memref<1x32xf32, #tpu.memory_space<vmem>>, %arg10: memref<32x16xf32, #tpu.memory_space<vmem>>, %arg11: memref<1x16xf32, #tpu.memory_space<vmem>>, %arg12: memref<1x8xf32, #tpu.memory_space<vmem>>, %arg13: memref<1x4xf32, #tpu.memory_space<vmem>>, %arg14: memref<8x4xf32, #tpu.memory_space<vmem>>) attributes {dimension_semantics = [], scalar_prefetch = 0 : i64, scratch_operands = 0 : i64, tpu.core_type = #tpu.core_type<tc>} {
    %c0 = arith.constant 0 : index
    %c0_0 = arith.constant 0 : index
    %0 = vector.load %arg0[%c0, %c0_0] : memref<8x4xf32, #tpu.memory_space<vmem>>, vector<8x4xf32>
    %c0_1 = arith.constant 0 : index
    %c0_2 = arith.constant 0 : index
    %1 = vector.load %arg1[%c0_1, %c0_2] : memref<8x8xf32, #tpu.memory_space<vmem>>, vector<8x8xf32>
    %cst = arith.constant 0.000000e+00 : f32
    %2 = vector.broadcast %cst : f32 to vector<8x8xf32>
    %3 = arith.cmpf ogt, %1, %2 : vector<8x8xf32>
    %cst_3 = arith.constant 0.000000e+00 : f32
    %cst_4 = arith.constant -1.000000e+30 : f32
    %4 = vector.broadcast %cst_3 : f32 to vector<8x8xf32>
    %5 = vector.broadcast %cst_4 : f32 to vector<8x8xf32>
    %6 = arith.select %3, %4, %5 : vector<8x8xi1>, vector<8x8xf32>
    %7 = tpu.concatenate %6, %6 in 0 : vector<8x8xf32>, vector<8x8xf32> -> vector<16x8xf32>
    %c0_5 = arith.constant 0 : index
    %c0_6 = arith.constant 0 : index
    %8 = vector.load %arg2[%c0_5, %c0_6] : memref<4x128xf32, #tpu.memory_space<vmem>>, vector<4x128xf32>
    %cst_7 = arith.constant dense<0.000000e+00> : vector<8x128xf32>
    %9 = tpu.matmul %0, %8, %cst_7 {dimension_numbers = #tpu.dot_dimension_numbers<[1], [0], [0], [1], [0, 0, 1, 1], [], []>} : vector<8x4xf32>, vector<4x128xf32>, vector<8x128xf32> -> vector<8x128xf32>
    %c0_8 = arith.constant 0 : index
    %c0_9 = arith.constant 0 : index
    %10 = vector.load %arg3[%c0_8, %c0_9] : memref<1x128xf32, #tpu.memory_space<vmem>>, vector<1x128xf32>
    %11 = vector.broadcast %10 : vector<1x128xf32> to vector<8x128xf32>
    %12 = arith.addf %9, %11 : vector<8x128xf32>
    %13 = vector.extract_strided_slice %12 {offsets = [0, 0], sizes = [8, 64], strides = [1, 1]} : vector<8x128xf32> to vector<8x64xf32>
    %14 = vector.extract_strided_slice %12 {offsets = [0, 64], sizes = [8, 64], strides = [1, 1]} : vector<8x128xf32> to vector<8x64xf32>
    %15 = vector.shape_cast %13 : vector<8x64xf32> to vector<1x8x64xf32>
    %16 = vector.shape_cast %14 : vector<8x64xf32> to vector<8x1x64xf32>
    %17 = vector.broadcast %15 : vector<1x8x64xf32> to vector<8x8x64xf32>
    %18 = vector.broadcast %16 : vector<8x1x64xf32> to vector<8x8x64xf32>
    %19 = arith.addf %17, %18 : vector<8x8x64xf32>
    %cst_10 = arith.constant 0.000000e+00 : f32
    %20 = vector.broadcast %cst_10 : f32 to vector<8x8x64xf32>
    %21 = arith.cmpf ogt, %19, %20 : vector<8x8x64xf32>
    %cst_11 = arith.constant 2.000000e-01 : f32
    %22 = vector.broadcast %cst_11 : f32 to vector<8x8x64xf32>
    %23 = arith.mulf %22, %19 : vector<8x8x64xf32>
    %24 = arith.select %21, %19, %23 : vector<8x8x64xi1>, vector<8x8x64xf32>
    %c0_12 = arith.constant 0 : index
    %c0_13 = arith.constant 0 : index
    %25 = vector.load %arg4[%c0_12, %c0_13] : memref<1x64xf32, #tpu.memory_space<vmem>>, vector<1x64xf32>
    %26 = vector.shape_cast %25 : vector<1x64xf32> to vector<1x1x64xf32>
    %27 = vector.broadcast %26 : vector<1x1x64xf32> to vector<8x8x64xf32>
    %28 = arith.mulf %24, %27 : vector<8x8x64xf32>
    %29 = vector.extract_strided_slice %28 {offsets = [0, 0, 0], sizes = [8, 8, 32], strides = [1, 1, 1]} : vector<8x8x64xf32> to vector<8x8x32xf32>
    %cst_14 = arith.constant dense<0.000000e+00> : vector<8x8xf32>
    %30 = vector.multi_reduction <add>, %29, %cst_14 [2] : vector<8x8x32xf32> to vector<8x8xf32>
    %31 = vector.extract_strided_slice %28 {offsets = [0, 0, 32], sizes = [8, 8, 32], strides = [1, 1, 1]} : vector<8x8x64xf32> to vector<8x8x32xf32>
    %cst_15 = arith.constant dense<0.000000e+00> : vector<8x8xf32>
    %32 = vector.multi_reduction <add>, %31, %cst_15 [2] : vector<8x8x32xf32> to vector<8x8xf32>
    %33 = tpu.concatenate %30, %32 in 0 : vector<8x8xf32>, vector<8x8xf32> -> vector<16x8xf32>
    %34 = arith.addf %33, %7 : vector<16x8xf32>
    %cst_16 = arith.constant dense<0xFF800000> : vector<16xf32>
    %35 = vector.multi_reduction <maximumf>, %34, %cst_16 [1] : vector<16x8xf32> to vector<16xf32>
    %36 = vector.shape_cast %35 : vector<16xf32> to vector<16x1xf32>
    %37 = vector.broadcast %36 : vector<16x1xf32> to vector<16x8xf32>
    %38 = arith.subf %34, %37 : vector<16x8xf32>
    %39 = math.exp %38 : vector<16x8xf32>
    %cst_17 = arith.constant dense<0.000000e+00> : vector<16xf32>
    %40 = vector.multi_reduction <add>, %39, %cst_17 [1] : vector<16x8xf32> to vector<16xf32>
    %41 = vector.shape_cast %40 : vector<16xf32> to vector<16x1xf32>
    %cst_18 = arith.constant 2.000000e+00 : f32
    %42 = vector.broadcast %cst_18 : f32 to vector<16x1xf32>
    %43 = arith.mulf %41, %42 : vector<16x1xf32>
    %44 = tpu.reciprocal %43 {approx = true} : vector<16x1xf32> -> vector<16x1xf32>
    %45 = vector.broadcast %44 : vector<16x1xf32> to vector<16x8xf32>
    %46 = arith.mulf %39, %45 : vector<16x8xf32>
    %47 = vector.extract_strided_slice %46 {offsets = [0, 0], sizes = [8, 8], strides = [1, 1]} : vector<16x8xf32> to vector<8x8xf32>
    %48 = vector.extract_strided_slice %46 {offsets = [8, 0], sizes = [8, 8], strides = [1, 1]} : vector<16x8xf32> to vector<8x8xf32>
    %49 = tpu.concatenate %47, %48 in 1 : vector<8x8xf32>, vector<8x8xf32> -> vector<8x16xf32>
    %50 = vector.extract_strided_slice %13 {offsets = [0, 0], sizes = [8, 32], strides = [1, 1]} : vector<8x64xf32> to vector<8x32xf32>
    %51 = vector.extract_strided_slice %13 {offsets = [0, 32], sizes = [8, 32], strides = [1, 1]} : vector<8x64xf32> to vector<8x32xf32>
    %52 = tpu.concatenate %50, %51 in 0 : vector<8x32xf32>, vector<8x32xf32> -> vector<16x32xf32>
    %cst_19 = arith.constant dense<0.000000e+00> : vector<8x32xf32>
    %53 = tpu.matmul %49, %52, %cst_19 {dimension_numbers = #tpu.dot_dimension_numbers<[1], [0], [0], [1], [0, 0, 1, 1], [], []>} : vector<8x16xf32>, vector<16x32xf32>, vector<8x32xf32> -> vector<8x32xf32>
    %c0_20 = arith.constant 0 : index
    %c0_21 = arith.constant 0 : index
    %54 = vector.load %arg5[%c0_20, %c0_21] : memref<1x32xf32, #tpu.memory_space<vmem>>, vector<1x32xf32>
    %55 = vector.broadcast %54 : vector<1x32xf32> to vector<8x32xf32>
    %56 = arith.addf %53, %55 : vector<8x32xf32>
    %cst_22 = arith.constant 0.000000e+00 : f32
    %57 = vector.broadcast %cst_22 : f32 to vector<8x32xf32>
    %58 = arith.maximumf %56, %57 : vector<8x32xf32>
    %c0_23 = arith.constant 0 : index
    %c0_24 = arith.constant 0 : index
    %59 = vector.load %arg6[%c0_23, %c0_24] : memref<32x128xf32, #tpu.memory_space<vmem>>, vector<32x128xf32>
    %cst_25 = arith.constant dense<0.000000e+00> : vector<8x128xf32>
    %60 = tpu.matmul %58, %59, %cst_25 {dimension_numbers = #tpu.dot_dimension_numbers<[1], [0], [0], [1], [0, 0, 1, 1], [], []>} : vector<8x32xf32>, vector<32x128xf32>, vector<8x128xf32> -> vector<8x128xf32>
    %c0_26 = arith.constant 0 : index
    %c0_27 = arith.constant 0 : index
    %61 = vector.load %arg7[%c0_26, %c0_27] : memref<1x128xf32, #tpu.memory_space<vmem>>, vector<1x128xf32>
    %62 = vector.broadcast %61 : vector<1x128xf32> to vector<8x128xf32>
    %63 = arith.addf %60, %62 : vector<8x128xf32>
    %64 = vector.extract_strided_slice %63 {offsets = [0, 0], sizes = [8, 64], strides = [1, 1]} : vector<8x128xf32> to vector<8x64xf32>
    %65 = vector.extract_strided_slice %63 {offsets = [0, 64], sizes = [8, 64], strides = [1, 1]} : vector<8x128xf32> to vector<8x64xf32>
    %66 = vector.shape_cast %64 : vector<8x64xf32> to vector<1x8x64xf32>
    %67 = vector.shape_cast %65 : vector<8x64xf32> to vector<8x1x64xf32>
    %68 = vector.broadcast %66 : vector<1x8x64xf32> to vector<8x8x64xf32>
    %69 = vector.broadcast %67 : vector<8x1x64xf32> to vector<8x8x64xf32>
    %70 = arith.addf %68, %69 : vector<8x8x64xf32>
    %cst_28 = arith.constant 0.000000e+00 : f32
    %71 = vector.broadcast %cst_28 : f32 to vector<8x8x64xf32>
    %72 = arith.cmpf ogt, %70, %71 : vector<8x8x64xf32>
    %cst_29 = arith.constant 2.000000e-01 : f32
    %73 = vector.broadcast %cst_29 : f32 to vector<8x8x64xf32>
    %74 = arith.mulf %73, %70 : vector<8x8x64xf32>
    %75 = arith.select %72, %70, %74 : vector<8x8x64xi1>, vector<8x8x64xf32>
    %c0_30 = arith.constant 0 : index
    %c0_31 = arith.constant 0 : index
    %76 = vector.load %arg8[%c0_30, %c0_31] : memref<1x64xf32, #tpu.memory_space<vmem>>, vector<1x64xf32>
    %77 = vector.shape_cast %76 : vector<1x64xf32> to vector<1x1x64xf32>
    %78 = vector.broadcast %77 : vector<1x1x64xf32> to vector<8x8x64xf32>
    %79 = arith.mulf %75, %78 : vector<8x8x64xf32>
    %80 = vector.extract_strided_slice %79 {offsets = [0, 0, 0], sizes = [8, 8, 32], strides = [1, 1, 1]} : vector<8x8x64xf32> to vector<8x8x32xf32>
    %cst_32 = arith.constant dense<0.000000e+00> : vector<8x8xf32>
    %81 = vector.multi_reduction <add>, %80, %cst_32 [2] : vector<8x8x32xf32> to vector<8x8xf32>
    %82 = vector.extract_strided_slice %79 {offsets = [0, 0, 32], sizes = [8, 8, 32], strides = [1, 1, 1]} : vector<8x8x64xf32> to vector<8x8x32xf32>
    %cst_33 = arith.constant dense<0.000000e+00> : vector<8x8xf32>
    %83 = vector.multi_reduction <add>, %82, %cst_33 [2] : vector<8x8x32xf32> to vector<8x8xf32>
    %84 = tpu.concatenate %81, %83 in 0 : vector<8x8xf32>, vector<8x8xf32> -> vector<16x8xf32>
    %85 = arith.addf %84, %7 : vector<16x8xf32>
    %cst_34 = arith.constant dense<0xFF800000> : vector<16xf32>
    %86 = vector.multi_reduction <maximumf>, %85, %cst_34 [1] : vector<16x8xf32> to vector<16xf32>
    %87 = vector.shape_cast %86 : vector<16xf32> to vector<16x1xf32>
    %88 = vector.broadcast %87 : vector<16x1xf32> to vector<16x8xf32>
    %89 = arith.subf %85, %88 : vector<16x8xf32>
    %90 = math.exp %89 : vector<16x8xf32>
    %cst_35 = arith.constant dense<0.000000e+00> : vector<16xf32>
    %91 = vector.multi_reduction <add>, %90, %cst_35 [1] : vector<16x8xf32> to vector<16xf32>
    %92 = vector.shape_cast %91 : vector<16xf32> to vector<16x1xf32>
    %cst_36 = arith.constant 2.000000e+00 : f32
    %93 = vector.broadcast %cst_36 : f32 to vector<16x1xf32>
    %94 = arith.mulf %92, %93 : vector<16x1xf32>
    %95 = tpu.reciprocal %94 {approx = true} : vector<16x1xf32> -> vector<16x1xf32>
    %96 = vector.broadcast %95 : vector<16x1xf32> to vector<16x8xf32>
    %97 = arith.mulf %90, %96 : vector<16x8xf32>
    %98 = vector.extract_strided_slice %97 {offsets = [0, 0], sizes = [8, 8], strides = [1, 1]} : vector<16x8xf32> to vector<8x8xf32>
    %99 = vector.extract_strided_slice %97 {offsets = [8, 0], sizes = [8, 8], strides = [1, 1]} : vector<16x8xf32> to vector<8x8xf32>
    %100 = tpu.concatenate %98, %99 in 1 : vector<8x8xf32>, vector<8x8xf32> -> vector<8x16xf32>
    %101 = vector.extract_strided_slice %64 {offsets = [0, 0], sizes = [8, 32], strides = [1, 1]} : vector<8x64xf32> to vector<8x32xf32>
    %102 = vector.extract_strided_slice %64 {offsets = [0, 32], sizes = [8, 32], strides = [1, 1]} : vector<8x64xf32> to vector<8x32xf32>
    %103 = tpu.concatenate %101, %102 in 0 : vector<8x32xf32>, vector<8x32xf32> -> vector<16x32xf32>
    %cst_37 = arith.constant dense<0.000000e+00> : vector<8x32xf32>
    %104 = tpu.matmul %100, %103, %cst_37 {dimension_numbers = #tpu.dot_dimension_numbers<[1], [0], [0], [1], [0, 0, 1, 1], [], []>} : vector<8x16xf32>, vector<16x32xf32>, vector<8x32xf32> -> vector<8x32xf32>
    %c0_38 = arith.constant 0 : index
    %c0_39 = arith.constant 0 : index
    %105 = vector.load %arg9[%c0_38, %c0_39] : memref<1x32xf32, #tpu.memory_space<vmem>>, vector<1x32xf32>
    %106 = vector.broadcast %105 : vector<1x32xf32> to vector<8x32xf32>
    %107 = arith.addf %104, %106 : vector<8x32xf32>
    %cst_40 = arith.constant 0.000000e+00 : f32
    %108 = vector.broadcast %cst_40 : f32 to vector<8x32xf32>
    %109 = arith.maximumf %107, %108 : vector<8x32xf32>
    %c0_41 = arith.constant 0 : index
    %c0_42 = arith.constant 0 : index
    %110 = vector.load %arg10[%c0_41, %c0_42] : memref<32x16xf32, #tpu.memory_space<vmem>>, vector<32x16xf32>
    %cst_43 = arith.constant dense<0.000000e+00> : vector<8x16xf32>
    %111 = tpu.matmul %109, %110, %cst_43 {dimension_numbers = #tpu.dot_dimension_numbers<[1], [0], [0], [1], [0, 0, 1, 1], [], []>} : vector<8x32xf32>, vector<32x16xf32>, vector<8x16xf32> -> vector<8x16xf32>
    %c0_44 = arith.constant 0 : index
    %c0_45 = arith.constant 0 : index
    %112 = vector.load %arg11[%c0_44, %c0_45] : memref<1x16xf32, #tpu.memory_space<vmem>>, vector<1x16xf32>
    %113 = vector.broadcast %112 : vector<1x16xf32> to vector<8x16xf32>
    %114 = arith.addf %111, %113 : vector<8x16xf32>
    %115 = vector.extract_strided_slice %114 {offsets = [0, 0], sizes = [8, 8], strides = [1, 1]} : vector<8x16xf32> to vector<8x8xf32>
    %116 = vector.extract_strided_slice %114 {offsets = [0, 8], sizes = [8, 8], strides = [1, 1]} : vector<8x16xf32> to vector<8x8xf32>
    %117 = vector.shape_cast %115 : vector<8x8xf32> to vector<1x8x8xf32>
    %118 = vector.shape_cast %116 : vector<8x8xf32> to vector<8x1x8xf32>
    %119 = vector.broadcast %117 : vector<1x8x8xf32> to vector<8x8x8xf32>
    %120 = vector.broadcast %118 : vector<8x1x8xf32> to vector<8x8x8xf32>
    %121 = arith.addf %119, %120 : vector<8x8x8xf32>
    %cst_46 = arith.constant 0.000000e+00 : f32
    %122 = vector.broadcast %cst_46 : f32 to vector<8x8x8xf32>
    %123 = arith.cmpf ogt, %121, %122 : vector<8x8x8xf32>
    %cst_47 = arith.constant 2.000000e-01 : f32
    %124 = vector.broadcast %cst_47 : f32 to vector<8x8x8xf32>
    %125 = arith.mulf %124, %121 : vector<8x8x8xf32>
    %126 = arith.select %123, %121, %125 : vector<8x8x8xi1>, vector<8x8x8xf32>
    %c0_48 = arith.constant 0 : index
    %c0_49 = arith.constant 0 : index
    %127 = vector.load %arg12[%c0_48, %c0_49] : memref<1x8xf32, #tpu.memory_space<vmem>>, vector<1x8xf32>
    %128 = vector.shape_cast %127 : vector<1x8xf32> to vector<1x1x8xf32>
    %129 = vector.broadcast %128 : vector<1x1x8xf32> to vector<8x8x8xf32>
    %130 = arith.mulf %126, %129 : vector<8x8x8xf32>
    %131 = vector.extract_strided_slice %130 {offsets = [0, 0, 0], sizes = [8, 8, 4], strides = [1, 1, 1]} : vector<8x8x8xf32> to vector<8x8x4xf32>
    %cst_50 = arith.constant dense<0.000000e+00> : vector<8x8xf32>
    %132 = vector.multi_reduction <add>, %131, %cst_50 [2] : vector<8x8x4xf32> to vector<8x8xf32>
    %133 = vector.extract_strided_slice %130 {offsets = [0, 0, 4], sizes = [8, 8, 4], strides = [1, 1, 1]} : vector<8x8x8xf32> to vector<8x8x4xf32>
    %cst_51 = arith.constant dense<0.000000e+00> : vector<8x8xf32>
    %134 = vector.multi_reduction <add>, %133, %cst_51 [2] : vector<8x8x4xf32> to vector<8x8xf32>
    %135 = tpu.concatenate %132, %134 in 0 : vector<8x8xf32>, vector<8x8xf32> -> vector<16x8xf32>
    %136 = arith.addf %135, %7 : vector<16x8xf32>
    %cst_52 = arith.constant dense<0xFF800000> : vector<16xf32>
    %137 = vector.multi_reduction <maximumf>, %136, %cst_52 [1] : vector<16x8xf32> to vector<16xf32>
    %138 = vector.shape_cast %137 : vector<16xf32> to vector<16x1xf32>
    %139 = vector.broadcast %138 : vector<16x1xf32> to vector<16x8xf32>
    %140 = arith.subf %136, %139 : vector<16x8xf32>
    %141 = math.exp %140 : vector<16x8xf32>
    %cst_53 = arith.constant dense<0.000000e+00> : vector<16xf32>
    %142 = vector.multi_reduction <add>, %141, %cst_53 [1] : vector<16x8xf32> to vector<16xf32>
    %143 = vector.shape_cast %142 : vector<16xf32> to vector<16x1xf32>
    %cst_54 = arith.constant 2.000000e+00 : f32
    %144 = vector.broadcast %cst_54 : f32 to vector<16x1xf32>
    %145 = arith.mulf %143, %144 : vector<16x1xf32>
    %146 = tpu.reciprocal %145 {approx = true} : vector<16x1xf32> -> vector<16x1xf32>
    %147 = vector.broadcast %146 : vector<16x1xf32> to vector<16x8xf32>
    %148 = arith.mulf %141, %147 : vector<16x8xf32>
    %149 = vector.extract_strided_slice %148 {offsets = [0, 0], sizes = [8, 8], strides = [1, 1]} : vector<16x8xf32> to vector<8x8xf32>
    %150 = vector.extract_strided_slice %148 {offsets = [8, 0], sizes = [8, 8], strides = [1, 1]} : vector<16x8xf32> to vector<8x8xf32>
    %151 = tpu.concatenate %149, %150 in 1 : vector<8x8xf32>, vector<8x8xf32> -> vector<8x16xf32>
    %152 = vector.extract_strided_slice %115 {offsets = [0, 0], sizes = [8, 4], strides = [1, 1]} : vector<8x8xf32> to vector<8x4xf32>
    %153 = vector.extract_strided_slice %115 {offsets = [0, 4], sizes = [8, 4], strides = [1, 1]} : vector<8x8xf32> to vector<8x4xf32>
    %154 = tpu.concatenate %152, %153 in 0 : vector<8x4xf32>, vector<8x4xf32> -> vector<16x4xf32>
    %cst_55 = arith.constant dense<0.000000e+00> : vector<8x4xf32>
    %155 = tpu.matmul %151, %154, %cst_55 {dimension_numbers = #tpu.dot_dimension_numbers<[1], [0], [0], [1], [0, 0, 1, 1], [], []>} : vector<8x16xf32>, vector<16x4xf32>, vector<8x4xf32> -> vector<8x4xf32>
    %c0_56 = arith.constant 0 : index
    %c0_57 = arith.constant 0 : index
    %156 = vector.load %arg13[%c0_56, %c0_57] : memref<1x4xf32, #tpu.memory_space<vmem>>, vector<1x4xf32>
    %157 = vector.broadcast %156 : vector<1x4xf32> to vector<8x4xf32>
    %158 = arith.addf %155, %157 : vector<8x4xf32>
    %cst_58 = arith.constant 0.000000e+00 : f32
    %159 = vector.broadcast %cst_58 : f32 to vector<8x4xf32>
    %160 = arith.maximumf %158, %159 : vector<8x4xf32>
    %cst_59 = arith.constant dense<0xFF800000> : vector<8xf32>
    %161 = vector.multi_reduction <maximumf>, %160, %cst_59 [1] : vector<8x4xf32> to vector<8xf32>
    %162 = vector.shape_cast %161 : vector<8xf32> to vector<8x1xf32>
    %163 = vector.broadcast %162 : vector<8x1xf32> to vector<8x4xf32>
    %164 = arith.subf %160, %163 : vector<8x4xf32>
    %165 = math.exp %164 : vector<8x4xf32>
    %cst_60 = arith.constant dense<0.000000e+00> : vector<8xf32>
    %166 = vector.multi_reduction <add>, %165, %cst_60 [1] : vector<8x4xf32> to vector<8xf32>
    %167 = vector.shape_cast %166 : vector<8xf32> to vector<8x1xf32>
    %168 = math.log %167 : vector<8x1xf32>
    %169 = vector.broadcast %168 : vector<8x1xf32> to vector<8x4xf32>
    %170 = arith.subf %164, %169 : vector<8x4xf32>
    %c0_61 = arith.constant 0 : index
    %c0_62 = arith.constant 0 : index
    %171 = vector.load %arg14[%c0_61, %c0_62] : memref<8x4xf32, #tpu.memory_space<vmem>>, vector<8x4xf32>
    tpu.vector_store %arg14[%c0_61, %c0_62], %170 {strides = array<i32>} : memref<8x4xf32, #tpu.memory_space<vmem>>, vector<8x4xf32>,
    return
  }
}

</mosaic_0001>

<llo_original>
// kernel: gatv2_forward_pallas.1
$region0: #{gatv2_forward_pallas.1}
  #allocation0 [shape = 'u32[]', space=smem, size = 0x4, offset = 0x4, fixed_abs, tag = 'smem constant byte address 0x4 - core index']
  #allocation1 [shape = 'u32[144,128]{1,0:T(1,128)}', space=vmem, size = 0x12000, scoped, tag = 'internal scratch']
  %s0 = inlined_call_operand.vmem [shape: f32[8,4], index: 0, kind: input, shape index: {}]
  %s1 = inlined_call_operand.vmem [shape: f32[8,8], index: 1, kind: input, shape index: {}]
  %s2 = inlined_call_operand.vmem [shape: f32[4,128], index: 2, kind: input, shape index: {}]
  %s3 = inlined_call_operand.vmem [shape: f32[1,128], index: 3, kind: input, shape index: {}]
  %s4 = inlined_call_operand.vmem [shape: f32[1,64], index: 4, kind: input, shape index: {}]
  %s5 = inlined_call_operand.vmem [shape: f32[1,32], index: 5, kind: input, shape index: {}]
  %s6 = inlined_call_operand.vmem [shape: f32[32,128], index: 6, kind: input, shape index: {}]
  %s7 = inlined_call_operand.vmem [shape: f32[1,128], index: 7, kind: input, shape index: {}]
  %s8 = inlined_call_operand.vmem [shape: f32[1,64], index: 8, kind: input, shape index: {}]
  %s9 = inlined_call_operand.vmem [shape: f32[1,32], index: 9, kind: input, shape index: {}]
  %s10 = inlined_call_operand.vmem [shape: f32[32,16], index: 10, kind: input, shape index: {}]
  %s11 = inlined_call_operand.vmem [shape: f32[1,16], index: 11, kind: input, shape index: {}]
  %s12 = inlined_call_operand.vmem [shape: f32[1,8], index: 12, kind: input, shape index: {}]
  %s13 = inlined_call_operand.vmem [shape: f32[1,4], index: 13, kind: input, shape index: {}]
  %s14 = inlined_call_operand.vmem [shape: f32[8,4], index: 14, kind: output, shape index: {}]
  %s15 = sld [smem:[#allocation0]]
  $region66: #{gatv2_forward_pallas.1} parent=0
    _
  %s17 = ssub.s32 1, %s15
  %s18 = scalar_select 0, %s17, %s15
  // Predicated region
  $region2: #{gatv2_forward_pallas.1} parent=0 // pred_check
    _
  $region3: #{gatv2_forward_pallas.1} parent=0 // pred_check_branch
    %20 = sbr.rel (0) target = $region5
  $region4: #{gatv2_forward_pallas.1} parent=0 // pred_region
    _
  $region5: #{gatv2_forward_pallas.1} parent=0 // pred_fallthru
    _
  // Predicated region
  $region6: #{gatv2_forward_pallas.1} parent=0 // pred_check
    _
  $region7: #{gatv2_forward_pallas.1} parent=0 // pred_check_branch
    %22 = sbr.rel (0) target = $region9
  $region8: #{gatv2_forward_pallas.1} parent=0 // pred_region
    _
  $region9: #{gatv2_forward_pallas.1} parent=0 // pred_fallthru
    _
  // Predicated region
  $region10: #{gatv2_forward_pallas.1} parent=0 // pred_check
    _
  $region11: #{gatv2_forward_pallas.1} parent=0 // pred_check_branch
    %24 = sbr.rel (0) target = $region13
  $region12: #{gatv2_forward_pallas.1} parent=0 // pred_region
    _
  $region13: #{gatv2_forward_pallas.1} parent=0 // pred_fallthru
    _
  // Predicated region
  $region14: #{gatv2_forward_pallas.1} parent=0 // pred_check
    _
  $region15: #{gatv2_forward_pallas.1} parent=0 // pred_check_branch
    %26 = sbr.rel (0) target = $region17
  $region16: #{gatv2_forward_pallas.1} parent=0 // pred_region
    _
  $region17: #{gatv2_forward_pallas.1} parent=0 // pred_fallthru
    _
  // Predicated region
  $region18: #{gatv2_forward_pallas.1} parent=0 // pred_check
    _
  $region19: #{gatv2_forward_pallas.1} parent=0 // pred_check_branch
    %28 = sbr.rel (0) target = $region21
  $region20: #{gatv2_forward_pallas.1} parent=0 // pred_region
    _
  $region21: #{gatv2_forward_pallas.1} parent=0 // pred_fallthru
    _
  // Predicated region
  $region22: #{gatv2_forward_pallas.1} parent=0 // pred_check
    _
  $region23: #{gatv2_forward_pallas.1} parent=0 // pred_check_branch
    %30 = sbr.rel (0) target = $region25
  $region24: #{gatv2_forward_pallas.1} parent=0 // pred_region
    _
  $region25: #{gatv2_forward_pallas.1} parent=0 // pred_fallthru
    _
  // Predicated region
  $region26: #{gatv2_forward_pallas.1} parent=0 // pred_check
    _
  $region27: #{gatv2_forward_pallas.1} parent=0 // pred_check_branch
    %32 = sbr.rel (0) target = $region29
  $region28: #{gatv2_forward_pallas.1} parent=0 // pred_region
    _
  $region29: #{gatv2_forward_pallas.1} parent=0 // pred_fallthru
    _
  // Predicated region
  $region30: #{gatv2_forward_pallas.1} parent=0 // pred_check
    _
  $region31: #{gatv2_forward_pallas.1} parent=0 // pred_check_branch
    %34 = sbr.rel (0) target = $region33
  $region32: #{gatv2_forward_pallas.1} parent=0 // pred_region
    _
  $region33: #{gatv2_forward_pallas.1} parent=0 // pred_fallthru
    _
  // Predicated region
  $region34: #{gatv2_forward_pallas.1} parent=0 // pred_check
    _
  $region35: #{gatv2_forward_pallas.1} parent=0 // pred_check_branch
    %36 = sbr.rel (0) target = $region37
  $region36: #{gatv2_forward_pallas.1} parent=0 // pred_region
    _
  $region37: #{gatv2_forward_pallas.1} parent=0 // pred_fallthru
    _
  // Predicated region
  $region38: #{gatv2_forward_pallas.1} parent=0 // pred_check
    _
  $region39: #{gatv2_forward_pallas.1} parent=0 // pred_check_branch
    %38 = sbr.rel (0) target = $region41
  $region40: #{gatv2_forward_pallas.1} parent=0 // pred_region
    _
  $region41: #{gatv2_forward_pallas.1} parent=0 // pred_fallthru
    _
  // Predicated region
  $region42: #{gatv2_forward_pallas.1} parent=0 // pred_check
    _
  $region43: #{gatv2_forward_pallas.1} parent=0 // pred_check_branch
    %40 = sbr.rel (0) target = $region45
  $region44: #{gatv2_forward_pallas.1} parent=0 // pred_region
    _
  $region45: #{gatv2_forward_pallas.1} parent=0 // pred_fallthru
    _
  // Predicated region
  $region46: #{gatv2_forward_pallas.1} parent=0 // pred_check
    _
  $region47: #{gatv2_forward_pallas.1} parent=0 // pred_check_branch
    %42 = sbr.rel (0) target = $region49
  $region48: #{gatv2_forward_pallas.1} parent=0 // pred_region
    _
  $region49: #{gatv2_forward_pallas.1} parent=0 // pred_fallthru
    _
  // Predicated region
  $region50: #{gatv2_forward_pallas.1} parent=0 // pred_check
    _
  $region51: #{gatv2_forward_pallas.1} parent=0 // pred_check_branch
    %44 = sbr.rel (0) target = $region53
  $region52: #{gatv2_forward_pallas.1} parent=0 // pred_region
    _
  $region53: #{gatv2_forward_pallas.1} parent=0 // pred_fallthru
    _
  // Predicated region
  $region54: #{gatv2_forward_pallas.1} parent=0 // pred_check
    _
  $region55: #{gatv2_forward_pallas.1} parent=0 // pred_check_branch
    %46 = sbr.rel (0) target = $region57
  $region56: #{gatv2_forward_pallas.1} parent=0 // pred_region
    _
  $region57: #{gatv2_forward_pallas.1} parent=0 // pred_fallthru
    _
  %v47 = vld [vmem:[%s0] sm:$0xff]
  %v48 = vld [vmem:[%s1] sm:$0xff]
  %vm49 = vcmp.gt.f32.partialorder %v48, 0.0
  %v50 = vsel %vm49, 0.0, -1e+30
  %v51 = vld [vmem:[%s2] sm:$0xf]
  %v52 = vld [vmem:[%s3] sm:$0x1]
  %v54 = vlaneseq
  %v55 = vshrl.u32 %v54, 7
  %v56 = vsub.s32 0, %v55
  %v57 = vrot.slane %v52, %v56
  %vm59 = vcmask 31744
  %v61 = vsel %vm59, %v47, 0
  %vm63 = vcmask 1043456
  %v65 = vsel %vm63, %v51, 0
  %67 = vmatprep.subr.mxu0 0.0
  %68 = vmatpush1.msra.mxu0 %v65
  %69 = vmatprep.subr.mxu0 0.0
  %70 = vmatpush1.msra.mxu0 0.0
  %71 = vmatprep.subr.mxu0 0.0
  %72 = vmatpush1.msra.mxu0 0.0
  %73 = vmatprep.subr.mxu0 0.0
  %74 = vmatpush1.msra.mxu0 0.0
  %75 = vmatprep.subr.mxu0 0.0
  %76 = vmatpush1.msra.mxu0 0.0
  %77 = vmatprep.subr.mxu0 0.0
  %78 = vmatpush1.msra.mxu0 0.0
  %79 = vmatprep.subr.mxu0 0.0
  %80 = vmatpush1.msra.mxu0 0.0
  %81 = vmatprep.subr.mxu0 0.0
  %82 = vmatpush1.msra.mxu0 0.0
  %83 = vmatprep.subr.mxu0 0.0
  %84 = vmatpush1.msra.mxu0 0.0
  %85 = vmatprep.subr.mxu0 0.0
  %86 = vmatpush1.msra.mxu0 0.0
  %87 = vmatprep.subr.mxu0 0.0
  %88 = vmatpush1.msra.mxu0 0.0
  %89 = vmatprep.subr.mxu0 0.0
  %90 = vmatpush1.msra.mxu0 0.0
  %91 = vmatprep.subr.mxu0 0.0
  %92 = vmatpush1.msra.mxu0 0.0
  %93 = vmatprep.subr.mxu0 0.0
  %94 = vmatpush1.msra.mxu0 0.0
  %95 = vmatprep.subr.mxu0 0.0
  %96 = vmatpush1.msra.mxu0 0.0
  %97 = vmatprep.subr.mxu0 0.0
  %98 = vmatpush1.msra.mxu0 0.0
  %99 = vmatprep.subr.mxu0 0.0
  %100 = vmatpush1.msra.mxu0 0.0
  %101 = vmatprep.subr.mxu0 0.0
  %102 = vmatpush1.msra.mxu0 0.0
  %103 = vmatprep.subr.mxu0 0.0
  %104 = vmatpush1.msra.mxu0 0.0
  %105 = vmatprep.subr.mxu0 0.0
  %106 = vmatpush1.msra.mxu0 0.0
  %107 = vmatprep.subr.mxu0 0.0
  %108 = vmatpush1.msra.mxu0 0.0
  %109 = vmatprep.subr.mxu0 0.0
  %110 = vmatpush1.msra.mxu0 0.0
  %111 = vmatprep.subr.mxu0 0.0
  %112 = vmatpush1.msra.mxu0 0.0
  %113 = vmatprep.subr.mxu0 0.0
  %114 = vmatpush1.msra.mxu0 0.0
  %115 = vmatprep.subr.mxu0 0.0
  %116 = vmatpush1.msra.mxu0 0.0
  %117 = vmatprep.subr.mxu0 0.0
  %118 = vmatpush1.msra.mxu0 0.0
  %119 = vmatprep.subr.mxu0 0.0
  %120 = vmatpush1.msra.mxu0 0.0
  %121 = vmatprep.subr.mxu0 0.0
  %122 = vmatpush1.msra.mxu0 0.0
  %123 = vmatprep.subr.mxu0 0.0
  %124 = vmatpush1.msra.mxu0 0.0
  %125 = vmatprep.subr.mxu0 0.0
  %126 = vmatpush1.msra.mxu0 0.0
  %127 = vmatprep.subr.mxu0 0.0
  %128 = vmatpush1.msra.mxu0 0.0
  %129 = vmatprep.subr.mxu0 0.0
  %130 = vmatpush1.msra.mxu0 0.0
  %131 = vmatprep.mubr.f32.mxu0 0.0
  %132 = vmatmul.mubr.f32.gmra.mrb[0].mxu0 %v61
  %v133 = vpop.f32.mrb[0].mxu0
  %v134 = vadd.f32 %v57, %v133
  %v135 = vpop.f32.mrb[0].mxu0
  %136 = vdwg.mxu0
  %v138 = vcombine.high %v134, %v134
  %v140 = vunpack.c.l.s4 1966171168
  %v141 = vunpack.c.0.s8 %v140
  %v142 = vlaneseq
  %v143 = vshrl.u32 %v142, 7
  %v144 = vsub.s32 %v141, %v143
  %v145 = vrot.slane %v134, %v144
  %v147 = vunpack.c.l.s4 1966171168
  %v148 = vunpack.c.0.s8 %v147
  %v149 = vlaneseq
  %v150 = vshrl.u32 %v149, 7
  %v151 = vsub.s32 %v148, %v150
  %v152 = vrot.slane %v138, %v151
  %v153 = vcombine.high %v145, %v145
  %v154 = vcombine.high %v152, %v152
  %v156 = vunpack.c.l.s4 1966171168
  %v157 = vunpack.c.0.s8 %v156
  %v158 = vlaneseq
  %v159 = vshrl.u32 %v158, 7
  %v160 = vsub.s32 %v157, %v159
  %v161 = vrot.slane %v145, %v160
  %v163 = vunpack.c.l.s4 1966171168
  %v164 = vunpack.c.0.s8 %v163
  %v165 = vlaneseq
  %v166 = vshrl.u32 %v165, 7
  %v167 = vsub.s32 %v164, %v166
  %v168 = vrot.slane %v152, %v167
  %v170 = vunpack.c.l.s4 1966171168
  %v171 = vunpack.c.0.s8 %v170
  %v172 = vlaneseq
  %v173 = vshrl.u32 %v172, 7
  %v174 = vsub.s32 %v171, %v173
  %v175 = vrot.slane %v153, %v174
  %v177 = vunpack.c.l.s4 1966171168
  %v178 = vunpack.c.0.s8 %v177
  %v179 = vlaneseq
  %v180 = vshrl.u32 %v179, 7
  %v181 = vsub.s32 %v178, %v180
  %v182 = vrot.slane %v154, %v181
  %v183 = vcombine.high %v161, %v161
  %v184 = vcombine.high %v168, %v168
  %v185 = vcombine.high %v175, %v175
  %v186 = vcombine.high %v182, %v182
  %v187 = vlaneseq
  %v188 = vshrl.u32 %v187, 7
  %v189 = vsub.s32 0, %v188
  %v190 = vrot.slane %v161, %v189
  %v191 = vlaneseq
  %v192 = vshrl.u32 %v191, 7
  %v193 = vsub.s32 0, %v192
  %v194 = vrot.slane %v175, %v193
  %v195 = vlaneseq
  %v196 = vshrl.u32 %v195, 7
  %v197 = vsub.s32 0, %v196
  %v198 = vrot.slane %v183, %v197
  %v199 = vlaneseq
  %v200 = vshrl.u32 %v199, 7
  %v201 = vsub.s32 0, %v200
  %v202 = vrot.slane %v185, %v201
  %v203 = vlaneseq
  %v204 = vshrl.u32 %v203, 7
  %v205 = vsub.s32 0, %v204
  %v206 = vrot.slane %v168, %v205
  %v207 = vlaneseq
  %v208 = vshrl.u32 %v207, 7
  %v209 = vsub.s32 0, %v208
  %v210 = vrot.slane %v182, %v209
  %v211 = vlaneseq
  %v212 = vshrl.u32 %v211, 7
  %v213 = vsub.s32 0, %v212
  %v214 = vrot.slane %v184, %v213
  %v215 = vlaneseq
  %v216 = vshrl.u32 %v215, 7
  %v217 = vsub.s32 0, %v216
  %v218 = vrot.slane %v186, %v217
  %219 = vrot.lane.b32.xlu0 %v190, 64
  %v220 = vpop.permute.xlu0 %219
  %221 = vrot.lane.b32.xlu0 %v194, 64
  %v222 = vpop.permute.xlu0 %221
  %223 = vrot.lane.b32.xlu0 %v198, 64
  %v224 = vpop.permute.xlu0 %223
  %225 = vrot.lane.b32.xlu0 %v202, 64
  %v226 = vpop.permute.xlu0 %225
  %227 = vrot.lane.b32.xlu0 %v206, 64
  %v228 = vpop.permute.xlu0 %227
  %229 = vrot.lane.b32.xlu0 %v210, 64
  %v230 = vpop.permute.xlu0 %229
  %231 = vrot.lane.b32.xlu0 %v214, 64
  %v232 = vpop.permute.xlu0 %231
  %233 = vrot.lane.b32.xlu0 %v218, 64
  %v234 = vpop.permute.xlu0 %233
  %v243 = vadd.f32 %v134, %v220
  %v244 = vadd.f32 %v134, %v222
  %v245 = vadd.f32 %v134, %v224
  %v246 = vadd.f32 %v134, %v226
  %v247 = vadd.f32 %v134, %v228
  %v248 = vadd.f32 %v134, %v230
  %v249 = vadd.f32 %v134, %v232
  %v250 = vadd.f32 %v134, %v234
  %vm251 = vcmp.gt.f32.partialorder %v243, 0.0
  %vm252 = vcmp.gt.f32.partialorder %v244, 0.0
  %vm253 = vcmp.gt.f32.partialorder %v245, 0.0
  %vm254 = vcmp.gt.f32.partialorder %v246, 0.0
  %vm255 = vcmp.gt.f32.partialorder %v247, 0.0
  %vm256 = vcmp.gt.f32.partialorder %v248, 0.0
  %vm257 = vcmp.gt.f32.partialorder %v249, 0.0
  %vm258 = vcmp.gt.f32.partialorder %v250, 0.0
  %v259 = vmul.f32 %v243, 0.2
  %v260 = vmul.f32 %v244, 0.2
  %v261 = vmul.f32 %v245, 0.2
  %v262 = vmul.f32 %v246, 0.2
  %v263 = vmul.f32 %v247, 0.2
  %v264 = vmul.f32 %v248, 0.2
  %v265 = vmul.f32 %v249, 0.2
  %v266 = vmul.f32 %v250, 0.2
  %v267 = vsel %vm251, %v243, %v259
  %v268 = vsel %vm252, %v244, %v260
  %v269 = vsel %vm253, %v245, %v261
  %v270 = vsel %vm254, %v246, %v262
  %v271 = vsel %vm255, %v247, %v263
  %v272 = vsel %vm256, %v248, %v264
  %v273 = vsel %vm257, %v249, %v265
  %v274 = vsel %vm258, %v250, %v266
  %v275 = vld [vmem:[%s4] sm:$0x1]
  %v277 = vlaneseq
  %v278 = vshrl.u32 %v277, 7
  %v279 = vsub.s32 0, %v278
  %v280 = vrot.slane %v275, %v279
  %v282 = vmul.f32 %v267, %v280
  %v283 = vmul.f32 %v268, %v280
  %v284 = vmul.f32 %v269, %v280
  %v285 = vmul.f32 %v270, %v280
  %v286 = vmul.f32 %v271, %v280
  %v287 = vmul.f32 %v272, %v280
  %v288 = vmul.f32 %v273, %v280
  %v289 = vmul.f32 %v274, %v280
  %vm290 = vcmask 261120
  %v291 = vsel %vm290, %v282, 0.0
  %292 = vadd.xlane.f32.xlu0 %v291
  %v293 = vpop.xlane.xlu0 %292
  %v294 = vsel %vm290, %v283, 0.0
  %295 = vadd.xlane.f32.xlu0 %v294
  %v296 = vpop.xlane.xlu0 %295
  %v297 = vsel %vm290, %v284, 0.0
  %298 = vadd.xlane.f32.xlu0 %v297
  %v299 = vpop.xlane.xlu0 %298
  %v300 = vsel %vm290, %v285, 0.0
  %301 = vadd.xlane.f32.xlu0 %v300
  %v302 = vpop.xlane.xlu0 %301
  %v303 = vsel %vm290, %v286, 0.0
  %304 = vadd.xlane.f32.xlu0 %v303
  %v305 = vpop.xlane.xlu0 %304
  %v306 = vsel %vm290, %v287, 0.0
  %307 = vadd.xlane.f32.xlu0 %v306
  %v308 = vpop.xlane.xlu0 %307
  %v309 = vsel %vm290, %v288, 0.0
  %310 = vadd.xlane.f32.xlu0 %v309
  %v311 = vpop.xlane.xlu0 %310
  %v312 = vsel %vm290, %v289, 0.0
  %313 = vadd.xlane.f32.xlu0 %v312
  %v314 = vpop.xlane.xlu0 %313
  %323 = vrot.lane.b32.xlu0 %v282, 96
  %v324 = vpop.permute.xlu0 %323
  %325 = vrot.lane.b32.xlu0 %v283, 96
  %v326 = vpop.permute.xlu0 %325
  %327 = vrot.lane.b32.xlu0 %v284, 96
  %v328 = vpop.permute.xlu0 %327
  %329 = vrot.lane.b32.xlu0 %v285, 96
  %v330 = vpop.permute.xlu0 %329
  %331 = vrot.lane.b32.xlu0 %v286, 96
  %v332 = vpop.permute.xlu0 %331
  %333 = vrot.lane.b32.xlu0 %v287, 96
  %v334 = vpop.permute.xlu0 %333
  %335 = vrot.lane.b32.xlu0 %v288, 96
  %v336 = vpop.permute.xlu0 %335
  %337 = vrot.lane.b32.xlu0 %v289, 96
  %v338 = vpop.permute.xlu0 %337
  %v347 = vsel %vm290, %v324, 0.0
  %348 = vadd.xlane.f32.xlu0 %v347
  %v349 = vpop.xlane.xlu0 %348
  %v350 = vsel %vm290, %v326, 0.0
  %351 = vadd.xlane.f32.xlu0 %v350
  %v352 = vpop.xlane.xlu0 %351
  %v353 = vsel %vm290, %v328, 0.0
  %354 = vadd.xlane.f32.xlu0 %v353
  %v355 = vpop.xlane.xlu0 %354
  %v356 = vsel %vm290, %v330, 0.0
  %357 = vadd.xlane.f32.xlu0 %v356
  %v358 = vpop.xlane.xlu0 %357
  %v359 = vsel %vm290, %v332, 0.0
  %360 = vadd.xlane.f32.xlu0 %v359
  %v361 = vpop.xlane.xlu0 %360
  %v362 = vsel %vm290, %v334, 0.0
  %363 = vadd.xlane.f32.xlu0 %v362
  %v364 = vpop.xlane.xlu0 %363
  %v365 = vsel %vm290, %v336, 0.0
  %366 = vadd.xlane.f32.xlu0 %v365
  %v367 = vpop.xlane.xlu0 %366
  %v368 = vsel %vm290, %v338, 0.0
  %369 = vadd.xlane.f32.xlu0 %v368
  %v370 = vpop.xlane.xlu0 %369
  %v379 = vlaneseq
  %v380 = vand.u32 %v379, 127
  %v381 = vlaneseq
  %v382 = vshrl.u32 %v381, 7
  %v383 = vsub.s32 %v380, %v382
  %v384 = vrot.slane %v293, %v383
  %v385 = vlaneseq
  %v386 = vshrl.u32 %v385, 7
  %v387 = vsub.s32 %v380, %v386
  %v388 = vrot.slane %v296, %v387
  %v389 = vlaneseq
  %v390 = vshrl.u32 %v389, 7
  %v391 = vsub.s32 %v380, %v390
  %v392 = vrot.slane %v299, %v391
  %v393 = vlaneseq
  %v394 = vshrl.u32 %v393, 7
  %v395 = vsub.s32 %v380, %v394
  %v396 = vrot.slane %v302, %v395
  %v397 = vlaneseq
  %v398 = vshrl.u32 %v397, 7
  %v399 = vsub.s32 %v380, %v398
  %v400 = vrot.slane %v305, %v399
  %v401 = vlaneseq
  %v402 = vshrl.u32 %v401, 7
  %v403 = vsub.s32 %v380, %v402
  %v404 = vrot.slane %v308, %v403
  %v405 = vlaneseq
  %v406 = vshrl.u32 %v405, 7
  %v407 = vsub.s32 %v380, %v406
  %v408 = vrot.slane %v311, %v407
  %v409 = vlaneseq
  %v410 = vshrl.u32 %v409, 7
  %v411 = vsub.s32 %v380, %v410
  %v412 = vrot.slane %v314, %v411
  %vm413 = vcmask 1041409
  %v414 = vsel %vm413, %v388, %v384
  %vm415 = vcmask 1042434
  %v416 = vsel %vm415, %v392, %v414
  %vm417 = vcmask 1043459
  %v418 = vsel %vm417, %v396, %v416
  %vm419 = vcmask 1044484
  %v420 = vsel %vm419, %v400, %v418
  %vm421 = vcmask 1045509
  %v422 = vsel %vm421, %v404, %v420
  %vm423 = vcmask 1046534
  %v424 = vsel %vm423, %v408, %v422
  %vm425 = vcmask 1047559
  %v426 = vsel %vm425, %v412, %v424
  %v436 = vlaneseq
  %v437 = vshrl.u32 %v436, 7
  %v438 = vsub.s32 %v380, %v437
  %v439 = vrot.slane %v349, %v438
  %v440 = vlaneseq
  %v441 = vshrl.u32 %v440, 7
  %v442 = vsub.s32 %v380, %v441
  %v443 = vrot.slane %v352, %v442
  %v444 = vlaneseq
  %v445 = vshrl.u32 %v444, 7
  %v446 = vsub.s32 %v380, %v445
  %v447 = vrot.slane %v355, %v446
  %v448 = vlaneseq
  %v449 = vshrl.u32 %v448, 7
  %v450 = vsub.s32 %v380, %v449
  %v451 = vrot.slane %v358, %v450
  %v452 = vlaneseq
  %v453 = vshrl.u32 %v452, 7
  %v454 = vsub.s32 %v380, %v453
  %v455 = vrot.slane %v361, %v454
  %v456 = vlaneseq
  %v457 = vshrl.u32 %v456, 7
  %v458 = vsub.s32 %v380, %v457
  %v459 = vrot.slane %v364, %v458
  %v460 = vlaneseq
  %v461 = vshrl.u32 %v460, 7
  %v462 = vsub.s32 %v380, %v461
  %v463 = vrot.slane %v367, %v462
  %v464 = vlaneseq
  %v465 = vshrl.u32 %v464, 7
  %v466 = vsub.s32 %v380, %v465
  %v467 = vrot.slane %v370, %v466
  %v468 = vsel %vm413, %v443, %v439
  %v469 = vsel %vm415, %v447, %v468
  %v470 = vsel %vm417, %v451, %v469
  %v471 = vsel %vm419, %v455, %v470
  %v472 = vsel %vm421, %v459, %v471
  %v473 = vsel %vm423, %v463, %v472
  %v474 = vsel %vm425, %v467, %v473
  %v476 = vadd.f32 %v426, %v50
  %v477 = vadd.f32 %v474, %v50
  %vm478 = vcmask 64512
  %v479 = vsel %vm478, %v476, -inf
  %480 = vmax.xlane.f32.xlu0 %v479
  %v481 = vpop.xlane.xlu0 %480
  %v482 = vsel %vm478, %v477, -inf
  %483 = vmax.xlane.f32.xlu0 %v482
  %v484 = vpop.xlane.xlu0 %483
  %v485 = vsub.f32 %v476, %v481
  %v486 = vsub.f32 %v477, %v484
  %v487 = vmul.f32 %v485, 1.442695
  %v488 = vpow.pop %v487
  %v489 = vmul.f32 %v486, 1.442695
  %v490 = vpow.pop %v489
  %v491 = vsel %vm478, %v488, 0.0
  %492 = vadd.xlane.f32.xlu0 %v491
  %v493 = vpop.xlane.xlu0 %492
  %v494 = vsel %vm478, %v490, 0.0
  %495 = vadd.xlane.f32.xlu0 %v494
  %v496 = vpop.xlane.xlu0 %495
  %v497 = vmul.f32 %v493, 2.0
  %v498 = vmul.f32 %v496, 2.0
  %v499 = vrcp.pop %v497
  %v500 = vrcp.pop %v498
  %v501 = vmul.f32 %v488, %v499
  %v502 = vmul.f32 %v490, %v500
  %504 = vrot.lane.b32.xlu0 %v502, 8
  %v505 = vpop.permute.xlu0 %504
  %v507 = vsel %vm478, %v501, %v505
  %508 = vrot.lane.b32.xlu0 %v134, 96
  %v509 = vpop.permute.xlu0 %508
  %v511 = vld [vmem:[%s5] sm:$0x1]
  %v513 = vlaneseq
  %v514 = vshrl.u32 %v513, 7
  %v515 = vsub.s32 0, %v514
  %v516 = vrot.slane %v511, %v515
  %vm518 = vcmask 130048
  %v520 = vsel %vm518, %v507, 0
  %522 = vmatprep.subr.mxu0 0.0
  %523 = vmatpush1.msra.mxu0 %v134
  %524 = vmatprep.subr.mxu0 0.0
  %525 = vmatpush1.msra.mxu0 %v509
  %526 = vmatprep.subr.mxu0 0.0
  %527 = vmatpush1.msra.mxu0 0.0
  %528 = vmatprep.subr.mxu0 0.0
  %529 = vmatpush1.msra.mxu0 0.0
  %530 = vmatprep.subr.mxu0 0.0
  %531 = vmatpush1.msra.mxu0 0.0
  %532 = vmatprep.subr.mxu0 0.0
  %533 = vmatpush1.msra.mxu0 0.0
  %534 = vmatprep.subr.mxu0 0.0
  %535 = vmatpush1.msra.mxu0 0.0
  %536 = vmatprep.subr.mxu0 0.0
  %537 = vmatpush1.msra.mxu0 0.0
  %538 = vmatprep.subr.mxu0 0.0
  %539 = vmatpush1.msra.mxu0 0.0
  %540 = vmatprep.subr.mxu0 0.0
  %541 = vmatpush1.msra.mxu0 0.0
  %542 = vmatprep.subr.mxu0 0.0
  %543 = vmatpush1.msra.mxu0 0.0
  %544 = vmatprep.subr.mxu0 0.0
  %545 = vmatpush1.msra.mxu0 0.0
  %546 = vmatprep.subr.mxu0 0.0
  %547 = vmatpush1.msra.mxu0 0.0
  %548 = vmatprep.subr.mxu0 0.0
  %549 = vmatpush1.msra.mxu0 0.0
  %550 = vmatprep.subr.mxu0 0.0
  %551 = vmatpush1.msra.mxu0 0.0
  %552 = vmatprep.subr.mxu0 0.0
  %553 = vmatpush1.msra.mxu0 0.0
  %554 = vmatprep.subr.mxu0 0.0
  %555 = vmatpush1.msra.mxu0 0.0
  %556 = vmatprep.subr.mxu0 0.0
  %557 = vmatpush1.msra.mxu0 0.0
  %558 = vmatprep.subr.mxu0 0.0
  %559 = vmatpush1.msra.mxu0 0.0
  %560 = vmatprep.subr.mxu0 0.0
  %561 = vmatpush1.msra.mxu0 0.0
  %562 = vmatprep.subr.mxu0 0.0
  %563 = vmatpush1.msra.mxu0 0.0
  %564 = vmatprep.subr.mxu0 0.0
  %565 = vmatpush1.msra.mxu0 0.0
  %566 = vmatprep.subr.mxu0 0.0
  %567 = vmatpush1.msra.mxu0 0.0
  %568 = vmatprep.subr.mxu0 0.0
  %569 = vmatpush1.msra.mxu0 0.0
  %570 = vmatprep.subr.mxu0 0.0
  %571 = vmatpush1.msra.mxu0 0.0
  %572 = vmatprep.subr.mxu0 0.0
  %573 = vmatpush1.msra.mxu0 0.0
  %574 = vmatprep.subr.mxu0 0.0
  %575 = vmatpush1.msra.mxu0 0.0
  %576 = vmatprep.subr.mxu0 0.0
  %577 = vmatpush1.msra.mxu0 0.0
  %578 = vmatprep.subr.mxu0 0.0
  %579 = vmatpush1.msra.mxu0 0.0
  %580 = vmatprep.subr.mxu0 0.0
  %581 = vmatpush1.msra.mxu0 0.0
  %582 = vmatprep.subr.mxu0 0.0
  %583 = vmatpush1.msra.mxu0 0.0
  %584 = vmatprep.subr.mxu0 0.0
  %585 = vmatpush1.msra.mxu0 0.0
  %586 = vmatprep.mubr.f32.mxu0 0.0
  %587 = vmatmul.mubr.f32.gmra.mrb[0].mxu0 %v520
  %v588 = vpop.f32.mrb[0].mxu0
  %v589 = vadd.f32 %v516, %v588
  %v590 = vpop.f32.mrb[0].mxu0
  %591 = vdwg.mxu0
  %v592 = vmax.f32 %v589, 0.0
  %v593 = vld [vmem:[%s6] sm:$0xff]
  %v594 = vld [vmem:[%s6 + $0x8] sm:$0xff]
  %v595 = vld [vmem:[%s6 + $0x10] sm:$0xff]
  %v596 = vld [vmem:[%s6 + $0x18] sm:$0xff]
  %v597 = vld [vmem:[%s7] sm:$0x1]
  %v599 = vlaneseq
  %v600 = vshrl.u32 %v599, 7
  %v601 = vsub.s32 0, %v600
  %v602 = vrot.slane %v597, %v601
  %v605 = vsel %vm290, %v592, 0
  %607 = vmatprep.subr.mxu0 0.0
  %608 = vmatpush1.msra.mxu0 %v593
  %609 = vmatprep.subr.mxu0 0.0
  %610 = vmatpush1.msra.mxu0 %v594
  %611 = vmatprep.subr.mxu0 0.0
  %612 = vmatpush1.msra.mxu0 %v595
  %613 = vmatprep.subr.mxu0 0.0
  %614 = vmatpush1.msra.mxu0 %v596
  %615 = vmatprep.subr.mxu0 0.0
  %616 = vmatpush1.msra.mxu0 0.0
  %617 = vmatprep.subr.mxu0 0.0
  %618 = vmatpush1.msra.mxu0 0.0
  %619 = vmatprep.subr.mxu0 0.0
  %620 = vmatpush1.msra.mxu0 0.0
  %621 = vmatprep.subr.mxu0 0.0
  %622 = vmatpush1.msra.mxu0 0.0
  %623 = vmatprep.subr.mxu0 0.0
  %624 = vmatpush1.msra.mxu0 0.0
  %625 = vmatprep.subr.mxu0 0.0
  %626 = vmatpush1.msra.mxu0 0.0
  %627 = vmatprep.subr.mxu0 0.0
  %628 = vmatpush1.msra.mxu0 0.0
  %629 = vmatprep.subr.mxu0 0.0
  %630 = vmatpush1.msra.mxu0 0.0
  %631 = vmatprep.subr.mxu0 0.0
  %632 = vmatpush1.msra.mxu0 0.0
  %633 = vmatprep.subr.mxu0 0.0
  %634 = vmatpush1.msra.mxu0 0.0
  %635 = vmatprep.subr.mxu0 0.0
  %636 = vmatpush1.msra.mxu0 0.0
  %637 = vmatprep.subr.mxu0 0.0
  %638 = vmatpush1.msra.mxu0 0.0
  %639 = vmatprep.subr.mxu0 0.0
  %640 = vmatpush1.msra.mxu0 0.0
  %641 = vmatprep.subr.mxu0 0.0
  %642 = vmatpush1.msra.mxu0 0.0
  %643 = vmatprep.subr.mxu0 0.0
  %644 = vmatpush1.msra.mxu0 0.0
  %645 = vmatprep.subr.mxu0 0.0
  %646 = vmatpush1.msra.mxu0 0.0
  %647 = vmatprep.subr.mxu0 0.0
  %648 = vmatpush1.msra.mxu0 0.0
  %649 = vmatprep.subr.mxu0 0.0
  %650 = vmatpush1.msra.mxu0 0.0
  %651 = vmatprep.subr.mxu0 0.0
  %652 = vmatpush1.msra.mxu0 0.0
  %653 = vmatprep.subr.mxu0 0.0
  %654 = vmatpush1.msra.mxu0 0.0
  %655 = vmatprep.subr.mxu0 0.0
  %656 = vmatpush1.msra.mxu0 0.0
  %657 = vmatprep.subr.mxu0 0.0
  %658 = vmatpush1.msra.mxu0 0.0
  %659 = vmatprep.subr.mxu0 0.0
  %660 = vmatpush1.msra.mxu0 0.0
  %661 = vmatprep.subr.mxu0 0.0
  %662 = vmatpush1.msra.mxu0 0.0
  %663 = vmatprep.subr.mxu0 0.0
  %664 = vmatpush1.msra.mxu0 0.0
  %665 = vmatprep.subr.mxu0 0.0
  %666 = vmatpush1.msra.mxu0 0.0
  %667 = vmatprep.subr.mxu0 0.0
  %668 = vmatpush1.msra.mxu0 0.0
  %669 = vmatprep.subr.mxu0 0.0
  %670 = vmatpush1.msra.mxu0 0.0
  %671 = vmatprep.mubr.f32.mxu0 0.0
  %672 = vmatmul.mubr.f32.gmra.mrb[0].mxu0 %v605
  %v673 = vpop.f32.mrb[0].mxu0
  %v674 = vadd.f32 %v602, %v673
  %v675 = vpop.f32.mrb[0].mxu0
  %676 = vdwg.mxu0
  %v678 = vcombine.high %v674, %v674
  %v680 = vunpack.c.l.s4 1966171168
  %v681 = vunpack.c.0.s8 %v680
  %v682 = vlaneseq
  %v683 = vshrl.u32 %v682, 7
  %v684 = vsub.s32 %v681, %v683
  %v685 = vrot.slane %v674, %v684
  %v687 = vunpack.c.l.s4 1966171168
  %v688 = vunpack.c.0.s8 %v687
  %v689 = vlaneseq
  %v690 = vshrl.u32 %v689, 7
  %v691 = vsub.s32 %v688, %v690
  %v692 = vrot.slane %v678, %v691
  %v693 = vcombine.high %v685, %v685
  %v694 = vcombine.high %v692, %v692
  %v696 = vunpack.c.l.s4 1966171168
  %v697 = vunpack.c.0.s8 %v696
  %v698 = vlaneseq
  %v699 = vshrl.u32 %v698, 7
  %v700 = vsub.s32 %v697, %v699
  %v701 = vrot.slane %v685, %v700
  %v703 = vunpack.c.l.s4 1966171168
  %v704 = vunpack.c.0.s8 %v703
  %v705 = vlaneseq
  %v706 = vshrl.u32 %v705, 7
  %v707 = vsub.s32 %v704, %v706
  %v708 = vrot.slane %v692, %v707
  %v710 = vunpack.c.l.s4 1966171168
  %v711 = vunpack.c.0.s8 %v710
  %v712 = vlaneseq
  %v713 = vshrl.u32 %v712, 7
  %v714 = vsub.s32 %v711, %v713
  %v715 = vrot.slane %v693, %v714
  %v717 = vunpack.c.l.s4 1966171168
  %v718 = vunpack.c.0.s8 %v717
  %v719 = vlaneseq
  %v720 = vshrl.u32 %v719, 7
  %v721 = vsub.s32 %v718, %v720
  %v722 = vrot.slane %v694, %v721
  %v723 = vcombine.high %v701, %v701
  %v724 = vcombine.high %v708, %v708
  %v725 = vcombine.high %v715, %v715
  %v726 = vcombine.high %v722, %v722
  %v727 = vlaneseq
  %v728 = vshrl.u32 %v727, 7
  %v729 = vsub.s32 0, %v728
  %v730 = vrot.slane %v701, %v729
  %v731 = vlaneseq
  %v732 = vshrl.u32 %v731, 7
  %v733 = vsub.s32 0, %v732
  %v734 = vrot.slane %v715, %v733
  %v735 = vlaneseq
  %v736 = vshrl.u32 %v735, 7
  %v737 = vsub.s32 0, %v736
  %v738 = vrot.slane %v723, %v737
  %v739 = vlaneseq
  %v740 = vshrl.u32 %v739, 7
  %v741 = vsub.s32 0, %v740
  %v742 = vrot.slane %v725, %v741
  %v743 = vlaneseq
  %v744 = vshrl.u32 %v743, 7
  %v745 = vsub.s32 0, %v744
  %v746 = vrot.slane %v708, %v745
  %v747 = vlaneseq
  %v748 = vshrl.u32 %v747, 7
  %v749 = vsub.s32 0, %v748
  %v750 = vrot.slane %v722, %v749
  %v751 = vlaneseq
  %v752 = vshrl.u32 %v751, 7
  %v753 = vsub.s32 0, %v752
  %v754 = vrot.slane %v724, %v753
  %v755 = vlaneseq
  %v756 = vshrl.u32 %v755, 7
  %v757 = vsub.s32 0, %v756
  %v758 = vrot.slane %v726, %v757
  %759 = vrot.lane.b32.xlu0 %v730, 64
  %v760 = vpop.permute.xlu0 %759
  %761 = vrot.lane.b32.xlu0 %v734, 64
  %v762 = vpop.permute.xlu0 %761
  %763 = vrot.lane.b32.xlu0 %v738, 64
  %v764 = vpop.permute.xlu0 %763
  %765 = vrot.lane.b32.xlu0 %v742, 64
  %v766 = vpop.permute.xlu0 %765
  %767 = vrot.lane.b32.xlu0 %v746, 64
  %v768 = vpop.permute.xlu0 %767
  %769 = vrot.lane.b32.xlu0 %v750, 64
  %v770 = vpop.permute.xlu0 %769
  %771 = vrot.lane.b32.xlu0 %v754, 64
  %v772 = vpop.permute.xlu0 %771
  %773 = vrot.lane.b32.xlu0 %v758, 64
  %v774 = vpop.permute.xlu0 %773
  %v783 = vadd.f32 %v674, %v760
  %v784 = vadd.f32 %v674, %v762
  %v785 = vadd.f32 %v674, %v764
  %v786 = vadd.f32 %v674, %v766
  %v787 = vadd.f32 %v674, %v768
  %v788 = vadd.f32 %v674, %v770
  %v789 = vadd.f32 %v674, %v772
  %v790 = vadd.f32 %v674, %v774
  %vm791 = vcmp.gt.f32.partialorder %v783, 0.0
  %vm792 = vcmp.gt.f32.partialorder %v784, 0.0
  %vm793 = vcmp.gt.f32.partialorder %v785, 0.0
  %vm794 = vcmp.gt.f32.partialorder %v786, 0.0
  %vm795 = vcmp.gt.f32.partialorder %v787, 0.0
  %vm796 = vcmp.gt.f32.partialorder %v788, 0.0
  %vm797 = vcmp.gt.f32.partialorder %v789, 0.0
  %vm798 = vcmp.gt.f32.partialorder %v790, 0.0
  %v799 = vmul.f32 %v783, 0.2
  %v800 = vmul.f32 %v784, 0.2
  %v801 = vmul.f32 %v785, 0.2
  %v802 = vmul.f32 %v786, 0.2
  %v803 = vmul.f32 %v787, 0.2
  %v804 = vmul.f32 %v788, 0.2
  %v805 = vmul.f32 %v789, 0.2
  %v806 = vmul.f32 %v790, 0.2
  %v807 = vsel %vm791, %v783, %v799
  %v808 = vsel %vm792, %v784, %v800
  %v809 = vsel %vm793, %v785, %v801
  %v810 = vsel %vm794, %v786, %v802
  %v811 = vsel %vm795, %v787, %v803
  %v812 = vsel %vm796, %v788, %v804
  %v813 = vsel %vm797, %v789, %v805
  %v814 = vsel %vm798, %v790, %v806
  %v815 = vld [vmem:[%s8] sm:$0x1]
  %v817 = vlaneseq
  %v818 = vshrl.u32 %v817, 7
  %v819 = vsub.s32 0, %v818
  %v820 = vrot.slane %v815, %v819
  %v822 = vmul.f32 %v807, %v820
  %v823 = vmul.f32 %v808, %v820
  %v824 = vmul.f32 %v809, %v820
  %v825 = vmul.f32 %v810, %v820
  %v826 = vmul.f32 %v811, %v820
  %v827 = vmul.f32 %v812, %v820
  %v828 = vmul.f32 %v813, %v820
  %v829 = vmul.f32 %v814, %v820
  %v830 = vsel %vm290, %v822, 0.0
  %831 = vadd.xlane.f32.xlu0 %v830
  %v832 = vpop.xlane.xlu0 %831
  %v833 = vsel %vm290, %v823, 0.0
  %834 = vadd.xlane.f32.xlu0 %v833
  %v835 = vpop.xlane.xlu0 %834
  %v836 = vsel %vm290, %v824, 0.0
  %837 = vadd.xlane.f32.xlu0 %v836
  %v838 = vpop.xlane.xlu0 %837
  %v839 = vsel %vm290, %v825, 0.0
  %840 = vadd.xlane.f32.xlu0 %v839
  %v841 = vpop.xlane.xlu0 %840
  %v842 = vsel %vm290, %v826, 0.0
  %843 = vadd.xlane.f32.xlu0 %v842
  %v844 = vpop.xlane.xlu0 %843
  %v845 = vsel %vm290, %v827, 0.0
  %846 = vadd.xlane.f32.xlu0 %v845
  %v847 = vpop.xlane.xlu0 %846
  %v848 = vsel %vm290, %v828, 0.0
  %849 = vadd.xlane.f32.xlu0 %v848
  %v850 = vpop.xlane.xlu0 %849
  %v851 = vsel %vm290, %v829, 0.0
  %852 = vadd.xlane.f32.xlu0 %v851
  %v853 = vpop.xlane.xlu0 %852
  %862 = vrot.lane.b32.xlu0 %v822, 96
  %v863 = vpop.permute.xlu0 %862
  %864 = vrot.lane.b32.xlu0 %v823, 96
  %v865 = vpop.permute.xlu0 %864
  %866 = vrot.lane.b32.xlu0 %v824, 96
  %v867 = vpop.permute.xlu0 %866
  %868 = vrot.lane.b32.xlu0 %v825, 96
  %v869 = vpop.permute.xlu0 %868
  %870 = vrot.lane.b32.xlu0 %v826, 96
  %v871 = vpop.permute.xlu0 %870
  %872 = vrot.lane.b32.xlu0 %v827, 96
  %v873 = vpop.permute.xlu0 %872
  %874 = vrot.lane.b32.xlu0 %v828, 96
  %v875 = vpop.permute.xlu0 %874
  %876 = vrot.lane.b32.xlu0 %v829, 96
  %v877 = vpop.permute.xlu0 %876
  %v886 = vsel %vm290, %v863, 0.0
  %887 = vadd.xlane.f32.xlu0 %v886
  %v888 = vpop.xlane.xlu0 %887
  %v889 = vsel %vm290, %v865, 0.0
  %890 = vadd.xlane.f32.xlu0 %v889
  %v891 = vpop.xlane.xlu0 %890
  %v892 = vsel %vm290, %v867, 0.0
  %893 = vadd.xlane.f32.xlu0 %v892
  %v894 = vpop.xlane.xlu0 %893
  %v895 = vsel %vm290, %v869, 0.0
  %896 = vadd.xlane.f32.xlu0 %v895
  %v897 = vpop.xlane.xlu0 %896
  %v898 = vsel %vm290, %v871, 0.0
  %899 = vadd.xlane.f32.xlu0 %v898
  %v900 = vpop.xlane.xlu0 %899
  %v901 = vsel %vm290, %v873, 0.0
  %902 = vadd.xlane.f32.xlu0 %v901
  %v903 = vpop.xlane.xlu0 %902
  %v904 = vsel %vm290, %v875, 0.0
  %905 = vadd.xlane.f32.xlu0 %v904
  %v906 = vpop.xlane.xlu0 %905
  %v907 = vsel %vm290, %v877, 0.0
  %908 = vadd.xlane.f32.xlu0 %v907
  %v909 = vpop.xlane.xlu0 %908
  %v918 = vlaneseq
  %v919 = vshrl.u32 %v918, 7
  %v920 = vsub.s32 %v380, %v919
  %v921 = vrot.slane %v832, %v920
  %v922 = vlaneseq
  %v923 = vshrl.u32 %v922, 7
  %v924 = vsub.s32 %v380, %v923
  %v925 = vrot.slane %v835, %v924
  %v926 = vlaneseq
  %v927 = vshrl.u32 %v926, 7
  %v928 = vsub.s32 %v380, %v927
  %v929 = vrot.slane %v838, %v928
  %v930 = vlaneseq
  %v931 = vshrl.u32 %v930, 7
  %v932 = vsub.s32 %v380, %v931
  %v933 = vrot.slane %v841, %v932
  %v934 = vlaneseq
  %v935 = vshrl.u32 %v934, 7
  %v936 = vsub.s32 %v380, %v935
  %v937 = vrot.slane %v844, %v936
  %v938 = vlaneseq
  %v939 = vshrl.u32 %v938, 7
  %v940 = vsub.s32 %v380, %v939
  %v941 = vrot.slane %v847, %v940
  %v942 = vlaneseq
  %v943 = vshrl.u32 %v942, 7
  %v944 = vsub.s32 %v380, %v943
  %v945 = vrot.slane %v850, %v944
  %v946 = vlaneseq
  %v947 = vshrl.u32 %v946, 7
  %v948 = vsub.s32 %v380, %v947
  %v949 = vrot.slane %v853, %v948
  %v950 = vsel %vm413, %v925, %v921
  %v951 = vsel %vm415, %v929, %v950
  %v952 = vsel %vm417, %v933, %v951
  %v953 = vsel %vm419, %v937, %v952
  %v954 = vsel %vm421, %v941, %v953
  %v955 = vsel %vm423, %v945, %v954
  %v956 = vsel %vm425, %v949, %v955
  %v966 = vlaneseq
  %v967 = vshrl.u32 %v966, 7
  %v968 = vsub.s32 %v380, %v967
  %v969 = vrot.slane %v888, %v968
  %v970 = vlaneseq
  %v971 = vshrl.u32 %v970, 7
  %v972 = vsub.s32 %v380, %v971
  %v973 = vrot.slane %v891, %v972
  %v974 = vlaneseq
  %v975 = vshrl.u32 %v974, 7
  %v976 = vsub.s32 %v380, %v975
  %v977 = vrot.slane %v894, %v976
  %v978 = vlaneseq
  %v979 = vshrl.u32 %v978, 7
  %v980 = vsub.s32 %v380, %v979
  %v981 = vrot.slane %v897, %v980
  %v982 = vlaneseq
  %v983 = vshrl.u32 %v982, 7
  %v984 = vsub.s32 %v380, %v983
  %v985 = vrot.slane %v900, %v984
  %v986 = vlaneseq
  %v987 = vshrl.u32 %v986, 7
  %v988 = vsub.s32 %v380, %v987
  %v989 = vrot.slane %v903, %v988
  %v990 = vlaneseq
  %v991 = vshrl.u32 %v990, 7
  %v992 = vsub.s32 %v380, %v991
  %v993 = vrot.slane %v906, %v992
  %v994 = vlaneseq
  %v995 = vshrl.u32 %v994, 7
  %v996 = vsub.s32 %v380, %v995
  %v997 = vrot.slane %v909, %v996
  %v998 = vsel %vm413, %v973, %v969
  %v999 = vsel %vm415, %v977, %v998
  %v1000 = vsel %vm417, %v981, %v999
  %v1001 = vsel %vm419, %v985, %v1000
  %v1002 = vsel %vm421, %v989, %v1001
  %v1003 = vsel %vm423, %v993, %v1002
  %v1004 = vsel %vm425, %v997, %v1003
  %v1006 = vadd.f32 %v956, %v50
  %v1007 = vadd.f32 %v1004, %v50
  %v1008 = vsel %vm478, %v1006, -inf
  %1009 = vmax.xlane.f32.xlu0 %v1008
  %v1010 = vpop.xlane.xlu0 %1009
  %v1011 = vsel %vm478, %v1007, -inf
  %1012 = vmax.xlane.f32.xlu0 %v1011
  %v1013 = vpop.xlane.xlu0 %1012
  %v1014 = vsub.f32 %v1006, %v1010
  %v1015 = vsub.f32 %v1007, %v1013
  %v1016 = vmul.f32 %v1014, 1.442695
  %v1017 = vpow.pop %v1016
  %v1018 = vmul.f32 %v1015, 1.442695
  %v1019 = vpow.pop %v1018
  %v1020 = vsel %vm478, %v1017, 0.0
  %1021 = vadd.xlane.f32.xlu0 %v1020
  %v1022 = vpop.xlane.xlu0 %1021
  %v1023 = vsel %vm478, %v1019, 0.0
  %1024 = vadd.xlane.f32.xlu0 %v1023
  %v1025 = vpop.xlane.xlu0 %1024
  %v1026 = vmul.f32 %v1022, 2.0
  %v1027 = vmul.f32 %v1025, 2.0
  %v1028 = vrcp.pop %v1026
  %v1029 = vrcp.pop %v1027
  %v1030 = vmul.f32 %v1017, %v1028
  %v1031 = vmul.f32 %v1019, %v1029
  %1033 = vrot.lane.b32.xlu0 %v1031, 8
  %v1034 = vpop.permute.xlu0 %1033
  %v1036 = vsel %vm478, %v1030, %v1034
  %1037 = vrot.lane.b32.xlu0 %v674, 96
  %v1038 = vpop.permute.xlu0 %1037
  %v1040 = vld [vmem:[%s9] sm:$0x1]
  %v1042 = vlaneseq
  %v1043 = vshrl.u32 %v1042, 7
  %v1044 = vsub.s32 0, %v1043
  %v1045 = vrot.slane %v1040, %v1044
  %v1048 = vsel %vm518, %v1036, 0
  %1050 = vmatprep.subr.mxu0 0.0
  %1051 = vmatpush1.msra.mxu0 %v674
  %1052 = vmatprep.subr.mxu0 0.0
  %1053 = vmatpush1.msra.mxu0 %v1038
  %1054 = vmatprep.subr.mxu0 0.0
  %1055 = vmatpush1.msra.mxu0 0.0
  %1056 = vmatprep.subr.mxu0 0.0
  %1057 = vmatpush1.msra.mxu0 0.0
  %1058 = vmatprep.subr.mxu0 0.0
  %1059 = vmatpush1.msra.mxu0 0.0
  %1060 = vmatprep.subr.mxu0 0.0
  %1061 = vmatpush1.msra.mxu0 0.0
  %1062 = vmatprep.subr.mxu0 0.0
  %1063 = vmatpush1.msra.mxu0 0.0
  %1064 = vmatprep.subr.mxu0 0.0
  %1065 = vmatpush1.msra.mxu0 0.0
  %1066 = vmatprep.subr.mxu0 0.0
  %1067 = vmatpush1.msra.mxu0 0.0
  %1068 = vmatprep.subr.mxu0 0.0
  %1069 = vmatpush1.msra.mxu0 0.0
  %1070 = vmatprep.subr.mxu0 0.0
  %1071 = vmatpush1.msra.mxu0 0.0
  %1072 = vmatprep.subr.mxu0 0.0
  %1073 = vmatpush1.msra.mxu0 0.0
  %1074 = vmatprep.subr.mxu0 0.0
  %1075 = vmatpush1.msra.mxu0 0.0
  %1076 = vmatprep.subr.mxu0 0.0
  %1077 = vmatpush1.msra.mxu0 0.0
  %1078 = vmatprep.subr.mxu0 0.0
  %1079 = vmatpush1.msra.mxu0 0.0
  %1080 = vmatprep.subr.mxu0 0.0
  %1081 = vmatpush1.msra.mxu0 0.0
  %1082 = vmatprep.subr.mxu0 0.0
  %1083 = vmatpush1.msra.mxu0 0.0
  %1084 = vmatprep.subr.mxu0 0.0
  %1085 = vmatpush1.msra.mxu0 0.0
  %1086 = vmatprep.subr.mxu0 0.0
  %1087 = vmatpush1.msra.mxu0 0.0
  %1088 = vmatprep.subr.mxu0 0.0
  %1089 = vmatpush1.msra.mxu0 0.0
  %1090 = vmatprep.subr.mxu0 0.0
  %1091 = vmatpush1.msra.mxu0 0.0
  %1092 = vmatprep.subr.mxu0 0.0
  %1093 = vmatpush1.msra.mxu0 0.0
  %1094 = vmatprep.subr.mxu0 0.0
  %1095 = vmatpush1.msra.mxu0 0.0
  %1096 = vmatprep.subr.mxu0 0.0
  %1097 = vmatpush1.msra.mxu0 0.0
  %1098 = vmatprep.subr.mxu0 0.0
  %1099 = vmatpush1.msra.mxu0 0.0
  %1100 = vmatprep.subr.mxu0 0.0
  %1101 = vmatpush1.msra.mxu0 0.0
  %1102 = vmatprep.subr.mxu0 0.0
  %1103 = vmatpush1.msra.mxu0 0.0
  %1104 = vmatprep.subr.mxu0 0.0
  %1105 = vmatpush1.msra.mxu0 0.0
  %1106 = vmatprep.subr.mxu0 0.0
  %1107 = vmatpush1.msra.mxu0 0.0
  %1108 = vmatprep.subr.mxu0 0.0
  %1109 = vmatpush1.msra.mxu0 0.0
  %1110 = vmatprep.subr.mxu0 0.0
  %1111 = vmatpush1.msra.mxu0 0.0
  %1112 = vmatprep.subr.mxu0 0.0
  %1113 = vmatpush1.msra.mxu0 0.0
  %1114 = vmatprep.mubr.f32.mxu0 0.0
  %1115 = vmatmul.mubr.f32.gmra.mrb[0].mxu0 %v1048
  %v1116 = vpop.f32.mrb[0].mxu0
  %v1117 = vadd.f32 %v1045, %v1116
  %v1118 = vpop.f32.mrb[0].mxu0
  %1119 = vdwg.mxu0
  %v1120 = vmax.f32 %v1117, 0.0
  %v1121 = vld [vmem:[%s10] sm:$0xff]
  %v1122 = vld [vmem:[%s10 + $0x8] sm:$0xff]
  %v1123 = vld [vmem:[%s10 + $0x10] sm:$0xff]
  %v1124 = vld [vmem:[%s10 + $0x18] sm:$0xff]
  %v1125 = vld [vmem:[%s11] sm:$0x1]
  %v1127 = vlaneseq
  %v1128 = vshrl.u32 %v1127, 7
  %v1129 = vsub.s32 0, %v1128
  %v1130 = vrot.slane %v1125, %v1129
  %v1133 = vsel %vm290, %v1120, 0
  %1135 = vmatprep.subr.mxu0 0.0
  %1136 = vmatpush1.msra.mxu0 %v1121
  %1137 = vmatprep.subr.mxu0 0.0
  %1138 = vmatpush1.msra.mxu0 %v1122
  %1139 = vmatprep.subr.mxu0 0.0
  %1140 = vmatpush1.msra.mxu0 %v1123
  %1141 = vmatprep.subr.mxu0 0.0
  %1142 = vmatpush1.msra.mxu0 %v1124
  %1143 = vmatprep.subr.mxu0 0.0
  %1144 = vmatpush1.msra.mxu0 0.0
  %1145 = vmatprep.subr.mxu0 0.0
  %1146 = vmatpush1.msra.mxu0 0.0
  %1147 = vmatprep.subr.mxu0 0.0
  %1148 = vmatpush1.msra.mxu0 0.0
  %1149 = vmatprep.subr.mxu0 0.0
  %1150 = vmatpush1.msra.mxu0 0.0
  %1151 = vmatprep.subr.mxu0 0.0
  %1152 = vmatpush1.msra.mxu0 0.0
  %1153 = vmatprep.subr.mxu0 0.0
  %1154 = vmatpush1.msra.mxu0 0.0
  %1155 = vmatprep.subr.mxu0 0.0
  %1156 = vmatpush1.msra.mxu0 0.0
  %1157 = vmatprep.subr.mxu0 0.0
  %1158 = vmatpush1.msra.mxu0 0.0
  %1159 = vmatprep.subr.mxu0 0.0
  %1160 = vmatpush1.msra.mxu0 0.0
  %1161 = vmatprep.subr.mxu0 0.0
  %1162 = vmatpush1.msra.mxu0 0.0
  %1163 = vmatprep.subr.mxu0 0.0
  %1164 = vmatpush1.msra.mxu0 0.0
  %1165 = vmatprep.subr.mxu0 0.0
  %1166 = vmatpush1.msra.mxu0 0.0
  %1167 = vmatprep.subr.mxu0 0.0
  %1168 = vmatpush1.msra.mxu0 0.0
  %1169 = vmatprep.subr.mxu0 0.0
  %1170 = vmatpush1.msra.mxu0 0.0
  %1171 = vmatprep.subr.mxu0 0.0
  %1172 = vmatpush1.msra.mxu0 0.0
  %1173 = vmatprep.subr.mxu0 0.0
  %1174 = vmatpush1.msra.mxu0 0.0
  %1175 = vmatprep.subr.mxu0 0.0
  %1176 = vmatpush1.msra.mxu0 0.0
  %1177 = vmatprep.subr.mxu0 0.0
  %1178 = vmatpush1.msra.mxu0 0.0
  %1179 = vmatprep.subr.mxu0 0.0
  %1180 = vmatpush1.msra.mxu0 0.0
  %1181 = vmatprep.subr.mxu0 0.0
  %1182 = vmatpush1.msra.mxu0 0.0
  %1183 = vmatprep.subr.mxu0 0.0
  %1184 = vmatpush1.msra.mxu0 0.0
  %1185 = vmatprep.subr.mxu0 0.0
  %1186 = vmatpush1.msra.mxu0 0.0
  %1187 = vmatprep.subr.mxu0 0.0
  %1188 = vmatpush1.msra.mxu0 0.0
  %1189 = vmatprep.subr.mxu0 0.0
  %1190 = vmatpush1.msra.mxu0 0.0
  %1191 = vmatprep.subr.mxu0 0.0
  %1192 = vmatpush1.msra.mxu0 0.0
  %1193 = vmatprep.subr.mxu0 0.0
  %1194 = vmatpush1.msra.mxu0 0.0
  %1195 = vmatprep.subr.mxu0 0.0
  %1196 = vmatpush1.msra.mxu0 0.0
  %1197 = vmatprep.subr.mxu0 0.0
  %1198 = vmatpush1.msra.mxu0 0.0
  %1199 = vmatprep.mubr.f32.mxu0 0.0
  %1200 = vmatmul.mubr.f32.gmra.mrb[0].mxu0 %v1133
  %v1201 = vpop.f32.mrb[0].mxu0
  %v1202 = vadd.f32 %v1130, %v1201
  %v1203 = vpop.f32.mrb[0].mxu0
  %1204 = vdwg.mxu0
  %v1206 = vcombine.high %v1202, %v1202
  %v1208 = vunpack.c.l.s4 1966171168
  %v1209 = vunpack.c.0.s8 %v1208
  %v1210 = vlaneseq
  %v1211 = vshrl.u32 %v1210, 7
  %v1212 = vsub.s32 %v1209, %v1211
  %v1213 = vrot.slane %v1202, %v1212
  %v1215 = vunpack.c.l.s4 1966171168
  %v1216 = vunpack.c.0.s8 %v1215
  %v1217 = vlaneseq
  %v1218 = vshrl.u32 %v1217, 7
  %v1219 = vsub.s32 %v1216, %v1218
  %v1220 = vrot.slane %v1206, %v1219
  %v1221 = vcombine.high %v1213, %v1213
  %v1222 = vcombine.high %v1220, %v1220
  %v1224 = vunpack.c.l.s4 1966171168
  %v1225 = vunpack.c.0.s8 %v1224
  %v1226 = vlaneseq
  %v1227 = vshrl.u32 %v1226, 7
  %v1228 = vsub.s32 %v1225, %v1227
  %v1229 = vrot.slane %v1213, %v1228
  %v1231 = vunpack.c.l.s4 1966171168
  %v1232 = vunpack.c.0.s8 %v1231
  %v1233 = vlaneseq
  %v1234 = vshrl.u32 %v1233, 7
  %v1235 = vsub.s32 %v1232, %v1234
  %v1236 = vrot.slane %v1220, %v1235
  %v1238 = vunpack.c.l.s4 1966171168
  %v1239 = vunpack.c.0.s8 %v1238
  %v1240 = vlaneseq
  %v1241 = vshrl.u32 %v1240, 7
  %v1242 = vsub.s32 %v1239, %v1241
  %v1243 = vrot.slane %v1221, %v1242
  %v1245 = vunpack.c.l.s4 1966171168
  %v1246 = vunpack.c.0.s8 %v1245
  %v1247 = vlaneseq
  %v1248 = vshrl.u32 %v1247, 7
  %v1249 = vsub.s32 %v1246, %v1248
  %v1250 = vrot.slane %v1222, %v1249
  %v1251 = vcombine.high %v1229, %v1229
  %v1252 = vcombine.high %v1236, %v1236
  %v1253 = vcombine.high %v1243, %v1243
  %v1254 = vcombine.high %v1250, %v1250
  %v1255 = vlaneseq
  %v1256 = vshrl.u32 %v1255, 7
  %v1257 = vsub.s32 0, %v1256
  %v1258 = vrot.slane %v1229, %v1257
  %v1259 = vlaneseq
  %v1260 = vshrl.u32 %v1259, 7
  %v1261 = vsub.s32 0, %v1260
  %v1262 = vrot.slane %v1243, %v1261
  %v1263 = vlaneseq
  %v1264 = vshrl.u32 %v1263, 7
  %v1265 = vsub.s32 0, %v1264
  %v1266 = vrot.slane %v1251, %v1265
  %v1267 = vlaneseq
  %v1268 = vshrl.u32 %v1267, 7
  %v1269 = vsub.s32 0, %v1268
  %v1270 = vrot.slane %v1253, %v1269
  %v1271 = vlaneseq
  %v1272 = vshrl.u32 %v1271, 7
  %v1273 = vsub.s32 0, %v1272
  %v1274 = vrot.slane %v1236, %v1273
  %v1275 = vlaneseq
  %v1276 = vshrl.u32 %v1275, 7
  %v1277 = vsub.s32 0, %v1276
  %v1278 = vrot.slane %v1250, %v1277
  %v1279 = vlaneseq
  %v1280 = vshrl.u32 %v1279, 7
  %v1281 = vsub.s32 0, %v1280
  %v1282 = vrot.slane %v1252, %v1281
  %v1283 = vlaneseq
  %v1284 = vshrl.u32 %v1283, 7
  %v1285 = vsub.s32 0, %v1284
  %v1286 = vrot.slane %v1254, %v1285
  %1287 = vrot.lane.b32.xlu0 %v1258, 120
  %v1288 = vpop.permute.xlu0 %1287
  %1289 = vrot.lane.b32.xlu0 %v1262, 120
  %v1290 = vpop.permute.xlu0 %1289
  %1291 = vrot.lane.b32.xlu0 %v1266, 120
  %v1292 = vpop.permute.xlu0 %1291
  %1293 = vrot.lane.b32.xlu0 %v1270, 120
  %v1294 = vpop.permute.xlu0 %1293
  %1295 = vrot.lane.b32.xlu0 %v1274, 120
  %v1296 = vpop.permute.xlu0 %1295
  %1297 = vrot.lane.b32.xlu0 %v1278, 120
  %v1298 = vpop.permute.xlu0 %1297
  %1299 = vrot.lane.b32.xlu0 %v1282, 120
  %v1300 = vpop.permute.xlu0 %1299
  %1301 = vrot.lane.b32.xlu0 %v1286, 120
  %v1302 = vpop.permute.xlu0 %1301
  %v1311 = vadd.f32 %v1202, %v1288
  %v1312 = vadd.f32 %v1202, %v1290
  %v1313 = vadd.f32 %v1202, %v1292
  %v1314 = vadd.f32 %v1202, %v1294
  %v1315 = vadd.f32 %v1202, %v1296
  %v1316 = vadd.f32 %v1202, %v1298
  %v1317 = vadd.f32 %v1202, %v1300
  %v1318 = vadd.f32 %v1202, %v1302
  %vm1319 = vcmp.gt.f32.partialorder %v1311, 0.0
  %vm1320 = vcmp.gt.f32.partialorder %v1312, 0.0
  %vm1321 = vcmp.gt.f32.partialorder %v1313, 0.0
  %vm1322 = vcmp.gt.f32.partialorder %v1314, 0.0
  %vm1323 = vcmp.gt.f32.partialorder %v1315, 0.0
  %vm1324 = vcmp.gt.f32.partialorder %v1316, 0.0
  %vm1325 = vcmp.gt.f32.partialorder %v1317, 0.0
  %vm1326 = vcmp.gt.f32.partialorder %v1318, 0.0
  %v1327 = vmul.f32 %v1311, 0.2
  %v1328 = vmul.f32 %v1312, 0.2
  %v1329 = vmul.f32 %v1313, 0.2
  %v1330 = vmul.f32 %v1314, 0.2
  %v1331 = vmul.f32 %v1315, 0.2
  %v1332 = vmul.f32 %v1316, 0.2
  %v1333 = vmul.f32 %v1317, 0.2
  %v1334 = vmul.f32 %v1318, 0.2
  %v1335 = vsel %vm1319, %v1311, %v1327
  %v1336 = vsel %vm1320, %v1312, %v1328
  %v1337 = vsel %vm1321, %v1313, %v1329
  %v1338 = vsel %vm1322, %v1314, %v1330
  %v1339 = vsel %vm1323, %v1315, %v1331
  %v1340 = vsel %vm1324, %v1316, %v1332
  %v1341 = vsel %vm1325, %v1317, %v1333
  %v1342 = vsel %vm1326, %v1318, %v1334
  %v1343 = vld [vmem:[%s12] sm:$0x1]
  %v1345 = vlaneseq
  %v1346 = vshrl.u32 %v1345, 7
  %v1347 = vsub.s32 0, %v1346
  %v1348 = vrot.slane %v1343, %v1347
  %v1350 = vmul.f32 %v1335, %v1348
  %v1351 = vmul.f32 %v1336, %v1348
  %v1352 = vmul.f32 %v1337, %v1348
  %v1353 = vmul.f32 %v1338, %v1348
  %v1354 = vmul.f32 %v1339, %v1348
  %v1355 = vmul.f32 %v1340, %v1348
  %v1356 = vmul.f32 %v1341, %v1348
  %v1357 = vmul.f32 %v1342, %v1348
  %v1358 = vsel %vm59, %v1350, 0.0
  %1359 = vadd.xlane.f32.xlu0 %v1358
  %v1360 = vpop.xlane.xlu0 %1359
  %v1361 = vsel %vm59, %v1351, 0.0
  %1362 = vadd.xlane.f32.xlu0 %v1361
  %v1363 = vpop.xlane.xlu0 %1362
  %v1364 = vsel %vm59, %v1352, 0.0
  %1365 = vadd.xlane.f32.xlu0 %v1364
  %v1366 = vpop.xlane.xlu0 %1365
  %v1367 = vsel %vm59, %v1353, 0.0
  %1368 = vadd.xlane.f32.xlu0 %v1367
  %v1369 = vpop.xlane.xlu0 %1368
  %v1370 = vsel %vm59, %v1354, 0.0
  %1371 = vadd.xlane.f32.xlu0 %v1370
  %v1372 = vpop.xlane.xlu0 %1371
  %v1373 = vsel %vm59, %v1355, 0.0
  %1374 = vadd.xlane.f32.xlu0 %v1373
  %v1375 = vpop.xlane.xlu0 %1374
  %v1376 = vsel %vm59, %v1356, 0.0
  %1377 = vadd.xlane.f32.xlu0 %v1376
  %v1378 = vpop.xlane.xlu0 %1377
  %v1379 = vsel %vm59, %v1357, 0.0
  %1380 = vadd.xlane.f32.xlu0 %v1379
  %v1381 = vpop.xlane.xlu0 %1380
  %1390 = vrot.lane.b32.xlu0 %v1350, 124
  %v1391 = vpop.permute.xlu0 %1390
  %1392 = vrot.lane.b32.xlu0 %v1351, 124
  %v1393 = vpop.permute.xlu0 %1392
  %1394 = vrot.lane.b32.xlu0 %v1352, 124
  %v1395 = vpop.permute.xlu0 %1394
  %1396 = vrot.lane.b32.xlu0 %v1353, 124
  %v1397 = vpop.permute.xlu0 %1396
  %1398 = vrot.lane.b32.xlu0 %v1354, 124
  %v1399 = vpop.permute.xlu0 %1398
  %1400 = vrot.lane.b32.xlu0 %v1355, 124
  %v1401 = vpop.permute.xlu0 %1400
  %1402 = vrot.lane.b32.xlu0 %v1356, 124
  %v1403 = vpop.permute.xlu0 %1402
  %1404 = vrot.lane.b32.xlu0 %v1357, 124
  %v1405 = vpop.permute.xlu0 %1404
  %v1414 = vsel %vm59, %v1391, 0.0
  %1415 = vadd.xlane.f32.xlu0 %v1414
  %v1416 = vpop.xlane.xlu0 %1415
  %v1417 = vsel %vm59, %v1393, 0.0
  %1418 = vadd.xlane.f32.xlu0 %v1417
  %v1419 = vpop.xlane.xlu0 %1418
  %v1420 = vsel %vm59, %v1395, 0.0
  %1421 = vadd.xlane.f32.xlu0 %v1420
  %v1422 = vpop.xlane.xlu0 %1421
  %v1423 = vsel %vm59, %v1397, 0.0
  %1424 = vadd.xlane.f32.xlu0 %v1423
  %v1425 = vpop.xlane.xlu0 %1424
  %v1426 = vsel %vm59, %v1399, 0.0
  %1427 = vadd.xlane.f32.xlu0 %v1426
  %v1428 = vpop.xlane.xlu0 %1427
  %v1429 = vsel %vm59, %v1401, 0.0
  %1430 = vadd.xlane.f32.xlu0 %v1429
  %v1431 = vpop.xlane.xlu0 %1430
  %v1432 = vsel %vm59, %v1403, 0.0
  %1433 = vadd.xlane.f32.xlu0 %v1432
  %v1434 = vpop.xlane.xlu0 %1433
  %v1435 = vsel %vm59, %v1405, 0.0
  %1436 = vadd.xlane.f32.xlu0 %v1435
  %v1437 = vpop.xlane.xlu0 %1436
  %v1446 = vlaneseq
  %v1447 = vshrl.u32 %v1446, 7
  %v1448 = vsub.s32 %v380, %v1447
  %v1449 = vrot.slane %v1360, %v1448
  %v1450 = vlaneseq
  %v1451 = vshrl.u32 %v1450, 7
  %v1452 = vsub.s32 %v380, %v1451
  %v1453 = vrot.slane %v1363, %v1452
  %v1454 = vlaneseq
  %v1455 = vshrl.u32 %v1454, 7
  %v1456 = vsub.s32 %v380, %v1455
  %v1457 = vrot.slane %v1366, %v1456
  %v1458 = vlaneseq
  %v1459 = vshrl.u32 %v1458, 7
  %v1460 = vsub.s32 %v380, %v1459
  %v1461 = vrot.slane %v1369, %v1460
  %v1462 = vlaneseq
  %v1463 = vshrl.u32 %v1462, 7
  %v1464 = vsub.s32 %v380, %v1463
  %v1465 = vrot.slane %v1372, %v1464
  %v1466 = vlaneseq
  %v1467 = vshrl.u32 %v1466, 7
  %v1468 = vsub.s32 %v380, %v1467
  %v1469 = vrot.slane %v1375, %v1468
  %v1470 = vlaneseq
  %v1471 = vshrl.u32 %v1470, 7
  %v1472 = vsub.s32 %v380, %v1471
  %v1473 = vrot.slane %v1378, %v1472
  %v1474 = vlaneseq
  %v1475 = vshrl.u32 %v1474, 7
  %v1476 = vsub.s32 %v380, %v1475
  %v1477 = vrot.slane %v1381, %v1476
  %v1478 = vsel %vm413, %v1453, %v1449
  %v1479 = vsel %vm415, %v1457, %v1478
  %v1480 = vsel %vm417, %v1461, %v1479
  %v1481 = vsel %vm419, %v1465, %v1480
  %v1482 = vsel %vm421, %v1469, %v1481
  %v1483 = vsel %vm423, %v1473, %v1482
  %v1484 = vsel %vm425, %v1477, %v1483
  %v1494 = vlaneseq
  %v1495 = vshrl.u32 %v1494, 7
  %v1496 = vsub.s32 %v380, %v1495
  %v1497 = vrot.slane %v1416, %v1496
  %v1498 = vlaneseq
  %v1499 = vshrl.u32 %v1498, 7
  %v1500 = vsub.s32 %v380, %v1499
  %v1501 = vrot.slane %v1419, %v1500
  %v1502 = vlaneseq
  %v1503 = vshrl.u32 %v1502, 7
  %v1504 = vsub.s32 %v380, %v1503
  %v1505 = vrot.slane %v1422, %v1504
  %v1506 = vlaneseq
  %v1507 = vshrl.u32 %v1506, 7
  %v1508 = vsub.s32 %v380, %v1507
  %v1509 = vrot.slane %v1425, %v1508
  %v1510 = vlaneseq
  %v1511 = vshrl.u32 %v1510, 7
  %v1512 = vsub.s32 %v380, %v1511
  %v1513 = vrot.slane %v1428, %v1512
  %v1514 = vlaneseq
  %v1515 = vshrl.u32 %v1514, 7
  %v1516 = vsub.s32 %v380, %v1515
  %v1517 = vrot.slane %v1431, %v1516
  %v1518 = vlaneseq
  %v1519 = vshrl.u32 %v1518, 7
  %v1520 = vsub.s32 %v380, %v1519
  %v1521 = vrot.slane %v1434, %v1520
  %v1522 = vlaneseq
  %v1523 = vshrl.u32 %v1522, 7
  %v1524 = vsub.s32 %v380, %v1523
  %v1525 = vrot.slane %v1437, %v1524
  %v1526 = vsel %vm413, %v1501, %v1497
  %v1527 = vsel %vm415, %v1505, %v1526
  %v1528 = vsel %vm417, %v1509, %v1527
  %v1529 = vsel %vm419, %v1513, %v1528
  %v1530 = vsel %vm421, %v1517, %v1529
  %v1531 = vsel %vm423, %v1521, %v1530
  %v1532 = vsel %vm425, %v1525, %v1531
  %v1534 = vadd.f32 %v1484, %v50
  %v1535 = vadd.f32 %v1532, %v50
  %v1536 = vsel %vm478, %v1534, -inf
  %1537 = vmax.xlane.f32.xlu0 %v1536
  %v1538 = vpop.xlane.xlu0 %1537
  %v1539 = vsel %vm478, %v1535, -inf
  %1540 = vmax.xlane.f32.xlu0 %v1539
  %v1541 = vpop.xlane.xlu0 %1540
  %v1542 = vsub.f32 %v1534, %v1538
  %v1543 = vsub.f32 %v1535, %v1541
  %v1544 = vmul.f32 %v1542, 1.442695
  %v1545 = vpow.pop %v1544
  %v1546 = vmul.f32 %v1543, 1.442695
  %v1547 = vpow.pop %v1546
  %v1548 = vsel %vm478, %v1545, 0.0
  %1549 = vadd.xlane.f32.xlu0 %v1548
  %v1550 = vpop.xlane.xlu0 %1549
  %v1551 = vsel %vm478, %v1547, 0.0
  %1552 = vadd.xlane.f32.xlu0 %v1551
  %v1553 = vpop.xlane.xlu0 %1552
  %v1554 = vmul.f32 %v1550, 2.0
  %v1555 = vmul.f32 %v1553, 2.0
  %v1556 = vrcp.pop %v1554
  %v1557 = vrcp.pop %v1555
  %v1558 = vmul.f32 %v1545, %v1556
  %v1559 = vmul.f32 %v1547, %v1557
  %1561 = vrot.lane.b32.xlu0 %v1559, 8
  %v1562 = vpop.permute.xlu0 %1561
  %v1564 = vsel %vm478, %v1558, %v1562
  %1565 = vrot.lane.b32.xlu0 %v1202, 124
  %v1566 = vpop.permute.xlu0 %1565
  %v1568 = vld [vmem:[%s13] sm:$0x1]
  %v1570 = vlaneseq
  %v1571 = vshrl.u32 %v1570, 7
  %v1572 = vsub.s32 0, %v1571
  %v1573 = vrot.slane %v1568, %v1572
  %v1576 = vsel %vm518, %v1564, 0
  %1578 = vmatprep.subr.mxu0 0.0
  %1579 = vmatpush1.msra.mxu0 %v1202
  %1580 = vmatprep.subr.mxu0 0.0
  %1581 = vmatpush1.msra.mxu0 %v1566
  %1582 = vmatprep.subr.mxu0 0.0
  %1583 = vmatpush1.msra.mxu0 0.0
  %1584 = vmatprep.subr.mxu0 0.0
  %1585 = vmatpush1.msra.mxu0 0.0
  %1586 = vmatprep.subr.mxu0 0.0
  %1587 = vmatpush1.msra.mxu0 0.0
  %1588 = vmatprep.subr.mxu0 0.0
  %1589 = vmatpush1.msra.mxu0 0.0
  %1590 = vmatprep.subr.mxu0 0.0
  %1591 = vmatpush1.msra.mxu0 0.0
  %1592 = vmatprep.subr.mxu0 0.0
  %1593 = vmatpush1.msra.mxu0 0.0
  %1594 = vmatprep.subr.mxu0 0.0
  %1595 = vmatpush1.msra.mxu0 0.0
  %1596 = vmatprep.subr.mxu0 0.0
  %1597 = vmatpush1.msra.mxu0 0.0
  %1598 = vmatprep.subr.mxu0 0.0
  %1599 = vmatpush1.msra.mxu0 0.0
  %1600 = vmatprep.subr.mxu0 0.0
  %1601 = vmatpush1.msra.mxu0 0.0
  %1602 = vmatprep.subr.mxu0 0.0
  %1603 = vmatpush1.msra.mxu0 0.0
  %1604 = vmatprep.subr.mxu0 0.0
  %1605 = vmatpush1.msra.mxu0 0.0
  %1606 = vmatprep.subr.mxu0 0.0
  %1607 = vmatpush1.msra.mxu0 0.0
  %1608 = vmatprep.subr.mxu0 0.0
  %1609 = vmatpush1.msra.mxu0 0.0
  %1610 = vmatprep.subr.mxu0 0.0
  %1611 = vmatpush1.msra.mxu0 0.0
  %1612 = vmatprep.subr.mxu0 0.0
  %1613 = vmatpush1.msra.mxu0 0.0
  %1614 = vmatprep.subr.mxu0 0.0
  %1615 = vmatpush1.msra.mxu0 0.0
  %1616 = vmatprep.subr.mxu0 0.0
  %1617 = vmatpush1.msra.mxu0 0.0
  %1618 = vmatprep.subr.mxu0 0.0
  %1619 = vmatpush1.msra.mxu0 0.0
  %1620 = vmatprep.subr.mxu0 0.0
  %1621 = vmatpush1.msra.mxu0 0.0
  %1622 = vmatprep.subr.mxu0 0.0
  %1623 = vmatpush1.msra.mxu0 0.0
  %1624 = vmatprep.subr.mxu0 0.0
  %1625 = vmatpush1.msra.mxu0 0.0
  %1626 = vmatprep.subr.mxu0 0.0
  %1627 = vmatpush1.msra.mxu0 0.0
  %1628 = vmatprep.subr.mxu0 0.0
  %1629 = vmatpush1.msra.mxu0 0.0
  %1630 = vmatprep.subr.mxu0 0.0
  %1631 = vmatpush1.msra.mxu0 0.0
  %1632 = vmatprep.subr.mxu0 0.0
  %1633 = vmatpush1.msra.mxu0 0.0
  %1634 = vmatprep.subr.mxu0 0.0
  %1635 = vmatpush1.msra.mxu0 0.0
  %1636 = vmatprep.subr.mxu0 0.0
  %1637 = vmatpush1.msra.mxu0 0.0
  %1638 = vmatprep.subr.mxu0 0.0
  %1639 = vmatpush1.msra.mxu0 0.0
  %1640 = vmatprep.subr.mxu0 0.0
  %1641 = vmatpush1.msra.mxu0 0.0
  %1642 = vmatprep.mubr.f32.mxu0 0.0
  %1643 = vmatmul.mubr.f32.gmra.mrb[0].mxu0 %v1576
  %v1644 = vpop.f32.mrb[0].mxu0
  %v1645 = vadd.f32 %v1573, %v1644
  %v1646 = vpop.f32.mrb[0].mxu0
  %1647 = vdwg.mxu0
  %v1648 = vmax.f32 %v1645, 0.0
  %v1649 = vsel %vm59, %v1648, -inf
  %1650 = vmax.xlane.f32.xlu0 %v1649
  %v1651 = vpop.xlane.xlu0 %1650
  %v1652 = vsub.f32 %v1648, %v1651
  %v1653 = vmul.f32 %v1652, 1.442695
  %v1654 = vpow.pop %v1653
  %v1655 = vsel %vm59, %v1654, 0.0
  %1656 = vadd.xlane.f32.xlu0 %v1655
  %v1657 = vpop.xlane.xlu0 %1656
  %v1658 = vlog2.pop %v1657
  %v1659 = vmul.f32 %v1658, 0.6931472
  %v1660 = vsub.f32 %v1652, %v1659
  %1661 = vst.msk [vmem:[%s14] sm:$0xff] %vm59, %v1660
  // Predicated region
  $region58: #{gatv2_forward_pallas.1} parent=0 // pred_check
    _
  $region59: #{gatv2_forward_pallas.1} parent=0 // pred_check_branch
    %1663 = sbr.rel (0) target = $region61
  $region60: #{gatv2_forward_pallas.1} parent=0 // pred_region
    _
  $region61: #{gatv2_forward_pallas.1} parent=0 // pred_fallthru
    _
  // Predicated region
  $region62: #{gatv2_forward_pallas.1} parent=0 // pred_check
    _
  $region63: #{gatv2_forward_pallas.1} parent=0 // pred_check_branch
    %1665 = sbr.rel (0) target = $region65
  $region64: #{gatv2_forward_pallas.1} parent=0 // pred_region
    _
  $region65: #{gatv2_forward_pallas.1} parent=0 // pred_fallthru
    _

</llo_original>
